<compile_context>
chip_gen: v7x
topology: tpu7x:2x2x1
jax: 0.10.0
libtpu: 0.0.40
codegen_flags: <defaults>
</compile_context>

<pallas_src>
import math
from functools import partial

import numpy as np
import jax
import jax.numpy as jnp
from jax.experimental import pallas as pl
from jax.experimental.pallas import tpu as pltpu

NEG_SLOPE = 0.01       # nn.LeakyReLU default negative_slope
BN_EPS = 1e-5          # nn.BatchNorm2d default eps


# ----------------------------------------------------------------------------
# Host-side constant preparation: fold BN, build banded conv matrices.
# ----------------------------------------------------------------------------
def _fold_bn(w, b, gamma, beta, mean, var, eps=BN_EPS):
    """Fold inference-mode BatchNorm into conv weights/bias (numpy, exact algebra)."""
    s = gamma / np.sqrt(var + eps)                       # (C,)
    w_f = w * s[:, None, None, None]                     # scale per out-channel
    b_f = (b - mean) * s + beta
    return w_f.astype(np.float32), b_f.astype(np.float32)


def _band_matrices(w_folded, width):
    """Build Mcat = [M_0 | M_1 | M_2] with M_dy of shape (W*C, W*C) such that

         (E_dy @ Z @ M_dy)[h, w*C + co]
             = sum_{ci, dx} w_folded[co, ci, dy, dx] * x[ci, h + dy - 1, w + dx - 1]

       with zero padding encoded by omitting out-of-range bands.
       Layout: Z[h, w*C + ci] = x[ci, h, w]."""
    c_out, c_in, kh, kw = w_folded.shape
    assert c_out == c_in and kh == 3 and kw == 3
    c = c_out
    wc = width * c
    m = np.zeros((3, wc, wc), np.float32)
    for dy in range(3):
        for dx in range(3):
            blk = w_folded[:, :, dy, dx].T.astype(np.float32)   # [ci, co]
            for wo in range(width):
                wi = wo + dx - 1
                if 0 <= wi < width:
                    m[dy, wi * c:(wi + 1) * c, wo * c:(wo + 1) * c] = blk
    return np.concatenate([m[0], m[1], m[2]], axis=1)           # (WC, 3*WC)


def _shift_matrices(height):
    """E_dy (H, H) 0/1 matrices: (E_dy @ Z)[h] = Z[h + dy - 1] (zero if out of range)."""
    e = np.zeros((3, height, height), np.float32)
    for dy in range(3):
        for h in range(height):
            hs = h + dy - 1
            if 0 <= hs < height:
                e[dy, h, hs] = 1.0
    return e


# ----------------------------------------------------------------------------
# Pallas kernel: one batch element per grid step, everything on the MXU/VPU.
# ----------------------------------------------------------------------------
def _residual_block_kernel(x_ref, e_ref, m1_ref, b1_ref, m2_ref, b2_ref, o_ref,
                           *, wc, slope):
    z = x_ref[0]                                                     # (H, W*C) f32

    def conv_bn(inp, m_ref, b_ref):
        # One wide MXU matmul produces all three per-dy horizontal/channel terms.
        t = jnp.dot(inp, m_ref[...], preferred_element_type=jnp.float32)   # (H, 3*WC)
        acc = jnp.dot(e_ref[0], t[:, 0:wc], preferred_element_type=jnp.float32)
        acc = acc + jnp.dot(e_ref[1], t[:, wc:2 * wc],
                            preferred_element_type=jnp.float32)
        acc = acc + jnp.dot(e_ref[2], t[:, 2 * wc:3 * wc],
                            preferred_element_type=jnp.float32)
        return acc + b_ref[...]                                      # (1, WC) broadcast

    h1 = conv_bn(z, m1_ref, b1_ref)                                  # conv1 + bn1
    h1 = jnp.where(h1 > 0, h1, slope * h1)                           # LeakyReLU
    h2 = conv_bn(h1, m2_ref, b2_ref)                                 # conv2 + bn2
    out = h2 + z                                                     # residual add
    o_ref[0] = jnp.where(out > 0, out, slope * out)                  # LeakyReLU


# ----------------------------------------------------------------------------
# Wrapper: NCHW in / NCHW out, constants prepared once on the host.
# ----------------------------------------------------------------------------
def residual_block_forward(x, params, *, eps=BN_EPS, negative_slope=NEG_SLOPE):
    """x: (N, C, H, W) float32; params: dict of conv/BN parameters."""
    n, c, h, w = x.shape
    wc = w * c

    p = {k: np.asarray(v, np.float32) for k, v in params.items()}
    w1f, b1f = _fold_bn(p["w1"], p["b1"], p["gamma1"], p["beta1"],
                        p["mean1"], p["var1"], eps)
    w2f, b2f = _fold_bn(p["w2"], p["b2"], p["gamma2"], p["beta2"],
                        p["mean2"], p["var2"], eps)

    m1 = jnp.asarray(_band_matrices(w1f, w))                 # (WC, 3*WC) resident
    m2 = jnp.asarray(_band_matrices(w2f, w))
    e = jnp.asarray(_shift_matrices(h))                      # (3, H, H)  resident
    b1row = jnp.asarray(np.tile(b1f, w).reshape(1, wc))      # (1, WC)
    b2row = jnp.asarray(np.tile(b2f, w).reshape(1, wc))

    # NCHW -> lane-dense (N, H, W*C)  (wrapper-side layout plumbing only)
    z = jnp.transpose(x.astype(jnp.float32), (0, 2, 3, 1)).reshape(n, h, wc)

    kernel = partial(_residual_block_kernel, wc=wc, slope=float(negative_slope))

    out = pl.pallas_call(
        kernel,
        out_shape=jax.ShapeDtypeStruct((n, h, wc), jnp.float32),
        grid_spec=pltpu.PrefetchScalarGridSpec(
            num_scalar_prefetch=0,
            grid=(n,),
            in_specs=[
                pl.BlockSpec((1, h, wc), lambda i: (i, 0, 0)),     # image tile
                pl.BlockSpec((3, h, h), lambda i: (0, 0, 0)),      # E shift mats
                pl.BlockSpec((wc, 3 * wc), lambda i: (0, 0)),      # Mcat1
                pl.BlockSpec((1, wc), lambda i: (0, 0)),           # bias1
                pl.BlockSpec((wc, 3 * wc), lambda i: (0, 0)),      # Mcat2
                pl.BlockSpec((1, wc), lambda i: (0, 0)),           # bias2
            ],
            out_specs=pl.BlockSpec((1, h, wc), lambda i: (i, 0, 0)),
        ),
        compiler_params=pltpu.CompilerParams(
            dimension_semantics=("parallel",)),                    # batch is independent
    )(z, e, m1, b1row, m2, b2row)

    # (N, H, W*C) -> NCHW
    return jnp.transpose(out.reshape(n, h, w, c), (0, 3, 1, 2))


# ----------------------------------------------------------------------------
# Pure-JAX reference (inference-mode BN), used only for a correctness check.
# ----------------------------------------------------------------------------
def _reference(x, params, *, eps=BN_EPS, negative_slope=NEG_SLOPE):
    p = {k: jnp.asarray(v, jnp.float32) for k, v in params.items()}

    def conv(v, w_, b_):
        y = jax.lax.conv_general_dilated(
            v, w_, window_strides=(1, 1), padding=((1, 1), (1, 1)),
            dimension_numbers=("NCHW", "OIHW", "NCHW"))
        return y + b_[None, :, None, None]

    def bn(v, gamma, beta, mean, var):
        inv = 1.0 / jnp.sqrt(var + eps)
        return (v - mean[None, :, None, None]) * (gamma * inv)[None, :, None, None] \
            + beta[None, :, None, None]

    def lrelu(v):
        return jnp.where(v > 0, v, negative_slope * v)

    out = lrelu(bn(conv(x, p["w1"], p["b1"]),
                   p["gamma1"], p["beta1"], p["mean1"], p["var1"]))
    out = bn(conv(out, p["w2"], p["b2"]),
             p["gamma2"], p["beta2"], p["mean2"], p["var2"])
    out = out + x
    return lrelu(out)


if __name__ == "__main__":
    key = jax.random.PRNGKey(0)
    ks = jax.random.split(key, 13)

    n, c, h, w = 2, 8, 16, 16          # W*C = 128 -> exactly one lane-dense vreg row
    kb = 1.0 / math.sqrt(c * 9)        # PyTorch Conv2d default init bound

    params = dict(
        w1=jax.random.uniform(ks[0], (c, c, 3, 3), minval=-kb, maxval=kb),
        b1=jax.random.uniform(ks[1], (c,), minval=-kb, maxval=kb),
        gamma1=jax.random.uniform(ks[2], (c,), minval=0.5, maxval=1.5),
        beta1=jax.random.uniform(ks[3], (c,), minval=-0.5, maxval=0.5),
        mean1=jax.random.uniform(ks[4], (c,), minval=-0.5, maxval=0.5),
        var1=jax.random.uniform(ks[5], (c,), minval=0.5, maxval=1.5),
        w2=jax.random.uniform(ks[6], (c, c, 3, 3), minval=-kb, maxval=kb),
        b2=jax.random.uniform(ks[7], (c,), minval=-kb, maxval=kb),
        gamma2=jax.random.uniform(ks[8], (c,), minval=0.5, maxval=1.5),
        beta2=jax.random.uniform(ks[9], (c,), minval=-0.5, maxval=0.5),
        mean2=jax.random.uniform(ks[10], (c,), minval=-0.5, maxval=0.5),
        var2=jax.random.uniform(ks[11], (c,), minval=0.5, maxval=1.5),
    )
    x = jax.random.normal(ks[12], (n, c, h, w), dtype=jnp.float32)

    out = residual_block_forward(x, params)
    out = jax.block_until_ready(out)
    assert out.shape == (n, c, h, w)
    assert out.dtype == jnp.float32

    ref = jax.block_until_ready(_reference(x, params))
    np.testing.assert_allclose(np.asarray(out), np.asarray(ref),
                               rtol=2e-2, atol=2e-2)
    print("KERNEL_OK")
</pallas_src>

<mosaic_0001>
module attributes {stable_mosaic.version = 11 : i64} {
  func.func @_residual_block_kernel(%arg0: i32, %arg1: memref<1x16x128xf32, #tpu.memory_space<vmem>>, %arg2: memref<3x16x16xf32, #tpu.memory_space<vmem>>, %arg3: memref<128x384xf32, #tpu.memory_space<vmem>>, %arg4: memref<1x128xf32, #tpu.memory_space<vmem>>, %arg5: memref<128x384xf32, #tpu.memory_space<vmem>>, %arg6: memref<1x128xf32, #tpu.memory_space<vmem>>, %arg7: memref<1x16x128xf32, #tpu.memory_space<vmem>>) attributes {dimension_semantics = [#tpu.dimension_semantics<parallel>], iteration_bounds = array<i64: 2>, scalar_prefetch = 0 : i64, scratch_operands = 0 : i64, tpu.core_type = #tpu.core_type<tc>, window_params = [{transform_indices = @transform_0, window_bounds = array<i64: 1, 16, 128>}, {pipeline_mode = #tpu.pipeline_mode<synchronous>, transform_indices = @transform_1, window_bounds = array<i64: 3, 16, 16>}, {pipeline_mode = #tpu.pipeline_mode<synchronous>, transform_indices = @transform_2, window_bounds = array<i64: 128, 384>}, {pipeline_mode = #tpu.pipeline_mode<synchronous>, transform_indices = @transform_3, window_bounds = array<i64: 1, 128>}, {pipeline_mode = #tpu.pipeline_mode<synchronous>, transform_indices = @transform_4, window_bounds = array<i64: 128, 384>}, {pipeline_mode = #tpu.pipeline_mode<synchronous>, transform_indices = @transform_5, window_bounds = array<i64: 1, 128>}, {transform_indices = @transform_6, window_bounds = array<i64: 1, 16, 128>}]} {
    %c0 = arith.constant 0 : index
    %c0_0 = arith.constant 0 : index
    %c0_1 = arith.constant 0 : index
    %0 = vector.load %arg1[%c0, %c0_0, %c0_1] : memref<1x16x128xf32, #tpu.memory_space<vmem>>, vector<1x16x128xf32>
    %1 = vector.shape_cast %0 : vector<1x16x128xf32> to vector<16x128xf32>
    %c0_2 = arith.constant 0 : index
    %c0_3 = arith.constant 0 : index
    %2 = vector.load %arg3[%c0_2, %c0_3] : memref<128x384xf32, #tpu.memory_space<vmem>>, vector<128x384xf32>
    %cst = arith.constant dense<0.000000e+00> : vector<16x384xf32>
    %3 = tpu.matmul %1, %2, %cst {dimension_numbers = #tpu.dot_dimension_numbers<[1], [0], [0], [1], [0, 0, 1, 1], [], []>} : vector<16x128xf32>, vector<128x384xf32>, vector<16x384xf32> -> vector<16x384xf32>
    %c0_4 = arith.constant 0 : index
    %c0_5 = arith.constant 0 : index
    %c0_6 = arith.constant 0 : index
    %4 = vector.load %arg2[%c0_4, %c0_5, %c0_6] : memref<3x16x16xf32, #tpu.memory_space<vmem>>, vector<1x16x16xf32>
    %5 = vector.shape_cast %4 : vector<1x16x16xf32> to vector<16x16xf32>
    %6 = vector.extract_strided_slice %3 {offsets = [0, 0], sizes = [16, 128], strides = [1, 1]} : vector<16x384xf32> to vector<16x128xf32>
    %cst_7 = arith.constant dense<0.000000e+00> : vector<16x128xf32>
    %7 = tpu.matmul %5, %6, %cst_7 {dimension_numbers = #tpu.dot_dimension_numbers<[1], [0], [0], [1], [0, 0, 1, 1], [], []>} : vector<16x16xf32>, vector<16x128xf32>, vector<16x128xf32> -> vector<16x128xf32>
    %c1 = arith.constant 1 : index
    %c0_8 = arith.constant 0 : index
    %c0_9 = arith.constant 0 : index
    %8 = vector.load %arg2[%c1, %c0_8, %c0_9] : memref<3x16x16xf32, #tpu.memory_space<vmem>>, vector<1x16x16xf32>
    %9 = vector.shape_cast %8 : vector<1x16x16xf32> to vector<16x16xf32>
    %10 = vector.extract_strided_slice %3 {offsets = [0, 128], sizes = [16, 128], strides = [1, 1]} : vector<16x384xf32> to vector<16x128xf32>
    %cst_10 = arith.constant dense<0.000000e+00> : vector<16x128xf32>
    %11 = tpu.matmul %9, %10, %cst_10 {dimension_numbers = #tpu.dot_dimension_numbers<[1], [0], [0], [1], [0, 0, 1, 1], [], []>} : vector<16x16xf32>, vector<16x128xf32>, vector<16x128xf32> -> vector<16x128xf32>
    %12 = arith.addf %7, %11 : vector<16x128xf32>
    %c2 = arith.constant 2 : index
    %c0_11 = arith.constant 0 : index
    %c0_12 = arith.constant 0 : index
    %13 = vector.load %arg2[%c2, %c0_11, %c0_12] : memref<3x16x16xf32, #tpu.memory_space<vmem>>, vector<1x16x16xf32>
    %14 = vector.shape_cast %13 : vector<1x16x16xf32> to vector<16x16xf32>
    %15 = vector.extract_strided_slice %3 {offsets = [0, 256], sizes = [16, 128], strides = [1, 1]} : vector<16x384xf32> to vector<16x128xf32>
    %cst_13 = arith.constant dense<0.000000e+00> : vector<16x128xf32>
    %16 = tpu.matmul %14, %15, %cst_13 {dimension_numbers = #tpu.dot_dimension_numbers<[1], [0], [0], [1], [0, 0, 1, 1], [], []>} : vector<16x16xf32>, vector<16x128xf32>, vector<16x128xf32> -> vector<16x128xf32>
    %17 = arith.addf %12, %16 : vector<16x128xf32>
    %c0_14 = arith.constant 0 : index
    %c0_15 = arith.constant 0 : index
    %18 = vector.load %arg4[%c0_14, %c0_15] : memref<1x128xf32, #tpu.memory_space<vmem>>, vector<1x128xf32>
    %19 = vector.broadcast %18 : vector<1x128xf32> to vector<16x128xf32>
    %20 = arith.addf %17, %19 : vector<16x128xf32>
    %cst_16 = arith.constant 0.000000e+00 : f32
    %21 = vector.broadcast %cst_16 : f32 to vector<16x128xf32>
    %22 = arith.cmpf ogt, %20, %21 : vector<16x128xf32>
    %cst_17 = arith.constant 0.00999999977 : f32
    %23 = vector.broadcast %cst_17 : f32 to vector<16x128xf32>
    %24 = arith.mulf %23, %20 : vector<16x128xf32>
    %25 = arith.select %22, %20, %24 : vector<16x128xi1>, vector<16x128xf32>
    %c0_18 = arith.constant 0 : index
    %c0_19 = arith.constant 0 : index
    %26 = vector.load %arg5[%c0_18, %c0_19] : memref<128x384xf32, #tpu.memory_space<vmem>>, vector<128x384xf32>
    %cst_20 = arith.constant dense<0.000000e+00> : vector<16x384xf32>
    %27 = tpu.matmul %25, %26, %cst_20 {dimension_numbers = #tpu.dot_dimension_numbers<[1], [0], [0], [1], [0, 0, 1, 1], [], []>} : vector<16x128xf32>, vector<128x384xf32>, vector<16x384xf32> -> vector<16x384xf32>
    %c0_21 = arith.constant 0 : index
    %c0_22 = arith.constant 0 : index
    %c0_23 = arith.constant 0 : index
    %28 = vector.load %arg2[%c0_21, %c0_22, %c0_23] : memref<3x16x16xf32, #tpu.memory_space<vmem>>, vector<1x16x16xf32>
    %29 = vector.shape_cast %28 : vector<1x16x16xf32> to vector<16x16xf32>
    %30 = vector.extract_strided_slice %27 {offsets = [0, 0], sizes = [16, 128], strides = [1, 1]} : vector<16x384xf32> to vector<16x128xf32>
    %cst_24 = arith.constant dense<0.000000e+00> : vector<16x128xf32>
    %31 = tpu.matmul %29, %30, %cst_24 {dimension_numbers = #tpu.dot_dimension_numbers<[1], [0], [0], [1], [0, 0, 1, 1], [], []>} : vector<16x16xf32>, vector<16x128xf32>, vector<16x128xf32> -> vector<16x128xf32>
    %c1_25 = arith.constant 1 : index
    %c0_26 = arith.constant 0 : index
    %c0_27 = arith.constant 0 : index
    %32 = vector.load %arg2[%c1_25, %c0_26, %c0_27] : memref<3x16x16xf32, #tpu.memory_space<vmem>>, vector<1x16x16xf32>
    %33 = vector.shape_cast %32 : vector<1x16x16xf32> to vector<16x16xf32>
    %34 = vector.extract_strided_slice %27 {offsets = [0, 128], sizes = [16, 128], strides = [1, 1]} : vector<16x384xf32> to vector<16x128xf32>
    %cst_28 = arith.constant dense<0.000000e+00> : vector<16x128xf32>
    %35 = tpu.matmul %33, %34, %cst_28 {dimension_numbers = #tpu.dot_dimension_numbers<[1], [0], [0], [1], [0, 0, 1, 1], [], []>} : vector<16x16xf32>, vector<16x128xf32>, vector<16x128xf32> -> vector<16x128xf32>
    %36 = arith.addf %31, %35 : vector<16x128xf32>
    %c2_29 = arith.constant 2 : index
    %c0_30 = arith.constant 0 : index
    %c0_31 = arith.constant 0 : index
    %37 = vector.load %arg2[%c2_29, %c0_30, %c0_31] : memref<3x16x16xf32, #tpu.memory_space<vmem>>, vector<1x16x16xf32>
    %38 = vector.shape_cast %37 : vector<1x16x16xf32> to vector<16x16xf32>
    %39 = vector.extract_strided_slice %27 {offsets = [0, 256], sizes = [16, 128], strides = [1, 1]} : vector<16x384xf32> to vector<16x128xf32>
    %cst_32 = arith.constant dense<0.000000e+00> : vector<16x128xf32>
    %40 = tpu.matmul %38, %39, %cst_32 {dimension_numbers = #tpu.dot_dimension_numbers<[1], [0], [0], [1], [0, 0, 1, 1], [], []>} : vector<16x16xf32>, vector<16x128xf32>, vector<16x128xf32> -> vector<16x128xf32>
    %41 = arith.addf %36, %40 : vector<16x128xf32>
    %c0_33 = arith.constant 0 : index
    %c0_34 = arith.constant 0 : index
    %42 = vector.load %arg6[%c0_33, %c0_34] : memref<1x128xf32, #tpu.memory_space<vmem>>, vector<1x128xf32>
    %43 = vector.broadcast %42 : vector<1x128xf32> to vector<16x128xf32>
    %44 = arith.addf %41, %43 : vector<16x128xf32>
    %45 = arith.addf %44, %1 : vector<16x128xf32>
    %cst_35 = arith.constant 0.000000e+00 : f32
    %46 = vector.broadcast %cst_35 : f32 to vector<16x128xf32>
    %47 = arith.cmpf ogt, %45, %46 : vector<16x128xf32>
    %cst_36 = arith.constant 0.00999999977 : f32
    %48 = vector.broadcast %cst_36 : f32 to vector<16x128xf32>
    %49 = arith.mulf %48, %45 : vector<16x128xf32>
    %50 = arith.select %47, %45, %49 : vector<16x128xi1>, vector<16x128xf32>
    %c0_37 = arith.constant 0 : index
    %c0_38 = arith.constant 0 : index
    %c0_39 = arith.constant 0 : index
    %51 = vector.load %arg7[%c0_37, %c0_38, %c0_39] : memref<1x16x128xf32, #tpu.memory_space<vmem>>, vector<1x16x128xf32>
    %52 = vector.shape_cast %51 : vector<1x16x128xf32> to vector<16x128xf32>
    %53 = vector.shape_cast %50 : vector<16x128xf32> to vector<1x16x128xf32>
    tpu.vector_store %arg7[%c0_37, %c0_38, %c0_39], %53 {strides = array<i32>} : memref<1x16x128xf32, #tpu.memory_space<vmem>>, vector<1x16x128xf32>,
    return
  }
  func.func @transform_0(%arg0: i32) -> (i32, i32, i32) {
    %c0_i32 = arith.constant 0 : i32
    %c0_i32_0 = arith.constant 0 : i32
    %c0_i32_1 = arith.constant 0 : i32
    return %arg0, %c0_i32, %c0_i32_0 : i32, i32, i32
  }
  func.func @transform_1(%arg0: i32) -> (i32, i32, i32) {
    %c0_i32 = arith.constant 0 : i32
    %c0_i32_0 = arith.constant 0 : i32
    %c0_i32_1 = arith.constant 0 : i32
    %c0_i32_2 = arith.constant 0 : i32
    return %c0_i32, %c0_i32_0, %c0_i32_1 : i32, i32, i32
  }
  func.func @transform_2(%arg0: i32) -> (i32, i32) {
    %c0_i32 = arith.constant 0 : i32
    %c0_i32_0 = arith.constant 0 : i32
    %c0_i32_1 = arith.constant 0 : i32
    return %c0_i32, %c0_i32_0 : i32, i32
  }
  func.func @transform_3(%arg0: i32) -> (i32, i32) {
    %c0_i32 = arith.constant 0 : i32
    %c0_i32_0 = arith.constant 0 : i32
    %c0_i32_1 = arith.constant 0 : i32
    return %c0_i32, %c0_i32_0 : i32, i32
  }
  func.func @transform_4(%arg0: i32) -> (i32, i32) {
    %c0_i32 = arith.constant 0 : i32
    %c0_i32_0 = arith.constant 0 : i32
    %c0_i32_1 = arith.constant 0 : i32
    return %c0_i32, %c0_i32_0 : i32, i32
  }
  func.func @transform_5(%arg0: i32) -> (i32, i32) {
    %c0_i32 = arith.constant 0 : i32
    %c0_i32_0 = arith.constant 0 : i32
    %c0_i32_1 = arith.constant 0 : i32
    return %c0_i32, %c0_i32_0 : i32, i32
  }
  func.func @transform_6(%arg0: i32) -> (i32, i32, i32) {
    %c0_i32 = arith.constant 0 : i32
    %c0_i32_0 = arith.constant 0 : i32
    %c0_i32_1 = arith.constant 0 : i32
    return %arg0, %c0_i32, %c0_i32_0 : i32, i32, i32
  }
}

</mosaic_0001>

<llo_original>
// kernel: tpu_custom_call.1
$region0: #{tpu_custom_call.1}
  #allocation0 [shape = 'u32[]', space=smem, size = 0x4, offset = 0x4, fixed_abs, tag = 'smem constant byte address 0x4 - core index']
  #allocation1 [shape = 'u32[144,128]{1,0:T(1,128)}', space=vmem, size = 0x12000, scoped, tag = 'internal scratch']
  %s0 = inlined_call_operand.hbm [shape: f32[2,16,128], index: 0, kind: input, shape index: {}]
  %s1 = inlined_call_operand.hbm [shape: f32[3,16,16], index: 1, kind: input, shape index: {}]
  %s2 = inlined_call_operand.hbm [shape: f32[128,384], index: 2, kind: input, shape index: {}]
  %s3 = inlined_call_operand.vmem [shape: f32[1,128], index: 3, kind: input, shape index: {}]
  %s4 = inlined_call_operand.hbm [shape: f32[128,384], index: 4, kind: input, shape index: {}]
  %s5 = inlined_call_operand.vmem [shape: f32[1,128], index: 5, kind: input, shape index: {}]
  %s6 = inlined_call_operand.hbm [shape: f32[2,16,128], index: 6, kind: output, shape index: {}]
  %s7 = sld [smem:[#allocation0]]
  $region73: #{tpu_custom_call.1} parent=0
    _
  %s9 = ssub.s32 1, %s7
  %s10 = scalar_select 0, %s9, %s7
  $region1: #{tpu_custom_call.1} parent=0
    #allocation2 [shape = 'u8[16384]{0}', space=vmem, size = 0x4000, scoped, tag = 'input window, operand 0']
    #allocation3 [shape = 's32[2]{0}', space=sflag, size = 0x8, scoped, tag = 'scoped memory for tpu_custom_call.1']
    #allocation4 [shape = 's32[2]{0}', space=sflag, size = 0x8, scoped, tag = 'scoped memory for tpu_custom_call.1']
    #allocation5 [shape = 'u8[24576]{0}', space=vmem, size = 0x6000, scoped, tag = 'input window, operand 1, single buffered']
    #allocation6 [shape = 's32[1]{0}', space=sflag, size = 0x4, scoped, tag = 'scoped memory for tpu_custom_call.1']
    #allocation7 [shape = 'u8[196608]{0}', space=vmem, size = 0x30000, scoped, tag = 'input window, operand 2, single buffered']
    #allocation8 [shape = 'u8[196608]{0}', space=vmem, size = 0x30000, scoped, tag = 'input window, operand 4, single buffered']
    #allocation9 [shape = 's32[1]{0}', space=sflag, size = 0x4, scoped, tag = 'scoped memory for tpu_custom_call.1']
    #allocation10 [shape = 'u8[16384]{0}', space=vmem, size = 0x4000, scoped, tag = 'output window, operand 0']
    %11 = vsyncpa [#allocation3], 0
    %s12 = scalar_lea.sflag [#allocation3], 1
    %13 = vsyncpa %s12, 0
    %14 = vsyncpa [#allocation6], 0
    %15 = vsyncpa [#allocation9], 0
    %16 = vsyncpa [#allocation4], 0
    %s17 = scalar_lea.sflag [#allocation4], 1
    %18 = vsyncpa %s17, 0
    loop: start=0, step=1, limit=4
    $region2: #{tpu_custom_call.1} parent=1 // loop_pre_header
      _
    $region3: #{tpu_custom_call.1} parent=1 // loop_header
      %s20 = sphi 0, %s24
      %p21 = scmp.ge.s32.totalorder %s20, 4
      %s30 = sphi 0, %s32
      %s33 = sphi 0, %s30
      %s34 = sphi 0, %s33
      %s50 = sphi 0, %s34
      %s54 = sphi 0, %s54
      %s56 = sphi 0, %s54
      %s57 = sphi 0, %s56
      %s71 = sphi 0, %s57
      %s75 = sphi 0, %s75
      %s77 = sphi 0, %s75
      %s78 = sphi 0, %s77
      %s92 = sphi 0, %s78
      %s96 = sphi 0, %s96
      %s98 = sphi 0, %s96
      %s99 = sphi 0, %s98
      %s113 = sphi 0, %s99
      %s117 = sphi 0, %s117
      %s119 = sphi 0, %s117
      %s120 = sphi 0, %s119
      %s134 = sphi 0, %s120
      %s138 = sphi 0, %s138
      %s140 = sphi 0, %s138
      %s141 = sphi 0, %s140
      %s155 = sphi 0, %s141
      %s161 = sphi 0, %s163
      %s164 = sphi 0, %s161
      %s165 = sphi 0, %s164
      %s181 = sphi 0, %s165
    $region4: #{tpu_custom_call.1} parent=1 // loop_header_branch
      %23 = sbr.rel (%p21) target = $region8
    $region5: #{tpu_custom_call.1} parent=1 // loop_body
      %s25 = ssub.s32 %s20, 1
      %s26 = ssub.s32 %s20, 2
      %s27 = sadd.s32 %s20, 1
      %s28 = ssub.s32 %s20, %s27
      %p29 = scmp.eq.s32.totalorder %s28, 0
      %s31 = sadd.s32 %s30, 1
      %s32 = scalar_select %p29, %s30, %s31
      %p35 = pneg %p29
      %p36 = scmp.eq.s32.totalorder %s20, 1
      %p37 = por %p35, %p36
      %p38 = scmp.ne.s32.totalorder %s30, %s33
      %p39 = scmp.eq.s32.totalorder %s20, 0
      %p40 = por %p38, %p39
      %p41 = scmp.ne.s32.totalorder %s30, %s33
      %p42 = scmp.eq.s32.totalorder %s25, 1
      %p43 = por %p41, %p42
      %p44 = scmp.ne.s32.totalorder %s33, %s34
      %p45 = scmp.eq.s32.totalorder %s25, 0
      %p46 = por %p44, %p45
      %p47 = scmp.ne.s32.totalorder %s33, %s34
      %p48 = scmp.eq.s32.totalorder %s26, 1
      %p49 = por %p47, %p48
      %p51 = scmp.ne.s32.totalorder %s34, %s50
      %p52 = scmp.eq.s32.totalorder %s26, 0
      %p53 = por %p51, %p52
      %s55 = sadd.s32 %s54, 1
      %p58 = scmp.eq.s32.totalorder %s20, 1
      %p59 = scmp.ne.s32.totalorder %s54, %s56
      %p60 = scmp.eq.s32.totalorder %s20, 0
      %p61 = por %p59, %p60
      %p62 = scmp.ne.s32.totalorder %s54, %s56
      %p63 = scmp.eq.s32.totalorder %s25, 1
      %p64 = por %p62, %p63
      %p65 = scmp.ne.s32.totalorder %s56, %s57
      %p66 = scmp.eq.s32.totalorder %s25, 0
      %p67 = por %p65, %p66
      %p68 = scmp.ne.s32.totalorder %s56, %s57
      %p69 = scmp.eq.s32.totalorder %s26, 1
      %p70 = por %p68, %p69
      %p72 = scmp.ne.s32.totalorder %s57, %s71
      %p73 = scmp.eq.s32.totalorder %s26, 0
      %p74 = por %p72, %p73
      %s76 = sadd.s32 %s75, 1
      %p79 = scmp.eq.s32.totalorder %s20, 1
      %p80 = scmp.ne.s32.totalorder %s75, %s77
      %p81 = scmp.eq.s32.totalorder %s20, 0
      %p82 = por %p80, %p81
      %p83 = scmp.ne.s32.totalorder %s75, %s77
      %p84 = scmp.eq.s32.totalorder %s25, 1
      %p85 = por %p83, %p84
      %p86 = scmp.ne.s32.totalorder %s77, %s78
      %p87 = scmp.eq.s32.totalorder %s25, 0
      %p88 = por %p86, %p87
      %p89 = scmp.ne.s32.totalorder %s77, %s78
      %p90 = scmp.eq.s32.totalorder %s26, 1
      %p91 = por %p89, %p90
      %p93 = scmp.ne.s32.totalorder %s78, %s92
      %p94 = scmp.eq.s32.totalorder %s26, 0
      %p95 = por %p93, %p94
      %s97 = sadd.s32 %s96, 1
      %p100 = scmp.eq.s32.totalorder %s20, 1
      %p101 = scmp.ne.s32.totalorder %s96, %s98
      %p102 = scmp.eq.s32.totalorder %s20, 0
      %p103 = por %p101, %p102
      %p104 = scmp.ne.s32.totalorder %s96, %s98
      %p105 = scmp.eq.s32.totalorder %s25, 1
      %p106 = por %p104, %p105
      %p107 = scmp.ne.s32.totalorder %s98, %s99
      %p108 = scmp.eq.s32.totalorder %s25, 0
      %p109 = por %p107, %p108
      %p110 = scmp.ne.s32.totalorder %s98, %s99
      %p111 = scmp.eq.s32.totalorder %s26, 1
      %p112 = por %p110, %p111
      %p114 = scmp.ne.s32.totalorder %s99, %s113
      %p115 = scmp.eq.s32.totalorder %s26, 0
      %p116 = por %p114, %p115
      %s118 = sadd.s32 %s117, 1
      %p121 = scmp.eq.s32.totalorder %s20, 1
      %p122 = scmp.ne.s32.totalorder %s117, %s119
      %p123 = scmp.eq.s32.totalorder %s20, 0
      %p124 = por %p122, %p123
      %p125 = scmp.ne.s32.totalorder %s117, %s119
      %p126 = scmp.eq.s32.totalorder %s25, 1
      %p127 = por %p125, %p126
      %p128 = scmp.ne.s32.totalorder %s119, %s120
      %p129 = scmp.eq.s32.totalorder %s25, 0
      %p130 = por %p128, %p129
      %p131 = scmp.ne.s32.totalorder %s119, %s120
      %p132 = scmp.eq.s32.totalorder %s26, 1
      %p133 = por %p131, %p132
      %p135 = scmp.ne.s32.totalorder %s120, %s134
      %p136 = scmp.eq.s32.totalorder %s26, 0
      %p137 = por %p135, %p136
      %s139 = sadd.s32 %s138, 1
      %p142 = scmp.eq.s32.totalorder %s20, 1
      %p143 = scmp.ne.s32.totalorder %s138, %s140
      %p144 = scmp.eq.s32.totalorder %s20, 0
      %p145 = por %p143, %p144
      %p146 = scmp.ne.s32.totalorder %s138, %s140
      %p147 = scmp.eq.s32.totalorder %s25, 1
      %p148 = por %p146, %p147
      %p149 = scmp.ne.s32.totalorder %s140, %s141
      %p150 = scmp.eq.s32.totalorder %s25, 0
      %p151 = por %p149, %p150
      %p152 = scmp.ne.s32.totalorder %s140, %s141
      %p153 = scmp.eq.s32.totalorder %s26, 1
      %p154 = por %p152, %p153
      %p156 = scmp.ne.s32.totalorder %s141, %s155
      %p157 = scmp.eq.s32.totalorder %s26, 0
      %p158 = por %p156, %p157
      %s159 = ssub.s32 %s20, %s27
      %p160 = scmp.eq.s32.totalorder %s159, 0
      %s162 = sadd.s32 %s161, 1
      %s163 = scalar_select %p160, %s161, %s162
      %p166 = pneg %p160
      %p167 = scmp.eq.s32.totalorder %s20, 1
      %p168 = por %p166, %p167
      %p169 = scmp.ne.s32.totalorder %s161, %s164
      %p170 = scmp.eq.s32.totalorder %s20, 0
      %p171 = por %p169, %p170
      %p172 = scmp.ne.s32.totalorder %s161, %s164
      %p173 = scmp.eq.s32.totalorder %s25, 1
      %p174 = por %p172, %p173
      %p175 = scmp.ne.s32.totalorder %s164, %s165
      %p176 = scmp.eq.s32.totalorder %s25, 0
      %p177 = por %p175, %p176
      %p178 = scmp.ne.s32.totalorder %s164, %s165
      %p179 = scmp.eq.s32.totalorder %s26, 1
      %p180 = por %p178, %p179
      %p182 = scmp.ne.s32.totalorder %s165, %s181
      %p183 = scmp.eq.s32.totalorder %s26, 0
      %p184 = por %p182, %p183
      %p185 = scmp.le.s32.totalorder 1, %s20
      %p186 = scmp.lt.s32.totalorder %s20, 3
      %p187 = pnand %p185, %p186
      %p188 = pneg %p187
      // Predicated region
      $region9: #{tpu_custom_call.1} parent=5 // pred_check
        _
      $region10: #{tpu_custom_call.1} parent=5 // pred_check_branch
        %190 = sbr.rel (%p187) target = $region12
      $region11: #{tpu_custom_call.1} parent=5 // pred_region
        %s191 = ssub.s32 %s20, 1
        // Predicated region
        $region13: #{tpu_custom_call.1} parent=11 // pred_check
          %p192 = pneg %p67
        $region14: #{tpu_custom_call.1} parent=11 // pred_check_branch
          %194 = sbr.rel (%p192) target = $region16
        $region15: #{tpu_custom_call.1} parent=11 // pred_region
          %s196 = ssub.s32 768, 768
          %197 = vsyncadd [#allocation6], %s196
          %s198 = sshll.u32 [#allocation5], 4
          %s199 = int_to_ptr.vmem [resolvable:$true] %s198
          %204 = dma.hbm_to_vmem [thread:$0]  %s1, 768, %s199, [#allocation6], 128, 128, 8
        $region16: #{tpu_custom_call.1} parent=11 // pred_fallthru
          _
        // Predicated region
        $region17: #{tpu_custom_call.1} parent=11 // pred_check
          %p205 = pneg %p88
        $region18: #{tpu_custom_call.1} parent=11 // pred_check_branch
          %207 = sbr.rel (%p205) target = $region20
        $region19: #{tpu_custom_call.1} parent=11 // pred_region
          %s209 = ssub.s32 6144, 6144
          %210 = vsyncadd [#allocation6], %s209
          %s211 = sshll.u32 [#allocation7], 4
          %s212 = int_to_ptr.vmem [resolvable:$true] %s211
          %217 = dma.hbm_to_vmem [thread:$0]  %s2, 6144, %s212, [#allocation6], 384, 384, 24
        $region20: #{tpu_custom_call.1} parent=11 // pred_fallthru
          _
        // Predicated region
        $region21: #{tpu_custom_call.1} parent=11 // pred_check
          %p218 = pneg %p109
        $region22: #{tpu_custom_call.1} parent=11 // pred_check_branch
          %220 = sbr.rel (%p218) target = $region24
        $region23: #{tpu_custom_call.1} parent=11 // pred_region
          _
        $region24: #{tpu_custom_call.1} parent=11 // pred_fallthru
          _
        // Predicated region
        $region25: #{tpu_custom_call.1} parent=11 // pred_check
          %p221 = pneg %p130
        $region26: #{tpu_custom_call.1} parent=11 // pred_check_branch
          %223 = sbr.rel (%p221) target = $region28
        $region27: #{tpu_custom_call.1} parent=11 // pred_region
          %s225 = ssub.s32 6144, 6144
          %226 = vsyncadd [#allocation9], %s225
          %s227 = sshll.u32 [#allocation8], 4
          %s228 = int_to_ptr.vmem [resolvable:$true] %s227
          %233 = dma.hbm_to_vmem [thread:$0]  %s4, 6144, %s228, [#allocation9], 384, 384, 24
        $region28: #{tpu_custom_call.1} parent=11 // pred_fallthru
          _
        // Predicated region
        $region29: #{tpu_custom_call.1} parent=11 // pred_check
          %p234 = pneg %p151
        $region30: #{tpu_custom_call.1} parent=11 // pred_check_branch
          %236 = sbr.rel (%p234) target = $region32
        $region31: #{tpu_custom_call.1} parent=11 // pred_region
          _
        $region32: #{tpu_custom_call.1} parent=11 // pred_fallthru
          _
      $region12: #{tpu_custom_call.1} parent=5 // pred_fallthru
        _
      %p237 = scmp.lt.s32.totalorder %s20, 2
      // Predicated region
      $region33: #{tpu_custom_call.1} parent=5 // pred_check
        %p238 = pneg %p237
      $region34: #{tpu_custom_call.1} parent=5 // pred_check_branch
        %240 = sbr.rel (%p238) target = $region36
      $region35: #{tpu_custom_call.1} parent=5 // pred_region
        // Predicated region
        $region37: #{tpu_custom_call.1} parent=35 // pred_check
          %p241 = pneg %p40
        $region38: #{tpu_custom_call.1} parent=35 // pred_check_branch
          %243 = sbr.rel (%p241) target = $region40
        $region39: #{tpu_custom_call.1} parent=35 // pred_region
          %s244 = sand.u32 %s30, 1
          %s245 = scalar_lea.sflag [#allocation3], %s244
          %s246 = sand.u32 %s30, 1
          %s247 = smul.addr %s246, 16
          %s248 = scalar_lea.vmem [#allocation2], %s247
          %s250 = ssub.s32 256, 256
          %251 = vsyncadd %s245, %s250
          %s252 = smul.addr %s20, 2
          %s253 = smul.addr %s252, 128
          %s254 = scalar_lea.hbm %s0, %s253
          %s255 = sshll.u32 %s248, 4
          %s256 = int_to_ptr.vmem [resolvable:$true] %s255
          %261 = dma.hbm_to_vmem [thread:$0]  %s254, 256, %s256, %s245, 128, 128, 8
        $region40: #{tpu_custom_call.1} parent=35 // pred_fallthru
          _
      $region36: #{tpu_custom_call.1} parent=5 // pred_fallthru
        _
      %p262 = scmp.le.s32.totalorder 1, %s20
      %p263 = scmp.lt.s32.totalorder %s20, 3
      %p264 = pnand %p262, %p263
      %p265 = pneg %p264
      // Predicated region
      $region41: #{tpu_custom_call.1} parent=5 // pred_check
        _
      $region42: #{tpu_custom_call.1} parent=5 // pred_check_branch
        %267 = sbr.rel (%p264) target = $region44
      $region43: #{tpu_custom_call.1} parent=5 // pred_region
        %s268 = ssub.s32 %s20, 1
        %s269 = sand.u32 %s33, 1
        %s270 = scalar_lea.sflag [#allocation3], %s269
        %s271 = sand.u32 %s33, 1
        %s272 = smul.addr %s271, 16
        %s273 = scalar_lea.vmem [#allocation2], %s272
        // Predicated region
        $region45: #{tpu_custom_call.1} parent=43 // pred_check
          %p274 = pneg %p46
        $region46: #{tpu_custom_call.1} parent=43 // pred_check_branch
          %276 = sbr.rel (%p274) target = $region48
        $region47: #{tpu_custom_call.1} parent=43 // pred_region
          %277 = dma.done %s270, 256
        $region48: #{tpu_custom_call.1} parent=43 // pred_fallthru
          _
        // Predicated region
        $region49: #{tpu_custom_call.1} parent=43 // pred_check
          %p278 = pneg %p67
        $region50: #{tpu_custom_call.1} parent=43 // pred_check_branch
          %280 = sbr.rel (%p278) target = $region52
        $region51: #{tpu_custom_call.1} parent=43 // pred_region
          %281 = dma.done [#allocation6], 768
        $region52: #{tpu_custom_call.1} parent=43 // pred_fallthru
          _
        // Predicated region
        $region53: #{tpu_custom_call.1} parent=43 // pred_check
          %p282 = pneg %p88
        $region54: #{tpu_custom_call.1} parent=43 // pred_check_branch
          %284 = sbr.rel (%p282) target = $region56
        $region55: #{tpu_custom_call.1} parent=43 // pred_region
          %285 = dma.done [#allocation6], 6144
        $region56: #{tpu_custom_call.1} parent=43 // pred_fallthru
          _
        // Predicated region
        $region57: #{tpu_custom_call.1} parent=43 // pred_check
          %p286 = pneg %p130
        $region58: #{tpu_custom_call.1} parent=43 // pred_check_branch
          %288 = sbr.rel (%p286) target = $region60
        $region59: #{tpu_custom_call.1} parent=43 // pred_region
          %289 = dma.done [#allocation9], 6144
        $region60: #{tpu_custom_call.1} parent=43 // pred_fallthru
          _
        %s290 = sand.u32 %s33, 1
        %s291 = scalar_lea.sflag [#allocation3], %s290
        %s292 = sand.u32 %s33, 1
        %s293 = smul.addr %s292, 16
        %s294 = scalar_lea.vmem [#allocation2], %s293
        %p295 = pneg %p46
        %p296 = pneg %p43
        %p297 = pneg %p67
        %p298 = pneg %p64
        %p299 = pneg %p88
        %p300 = pneg %p85
        %p301 = pneg %p109
        %p302 = pneg %p106
        %p303 = pneg %p130
        %p304 = pneg %p127
        %p305 = pneg %p151
        %p306 = pneg %p148
        %p307 = pneg %p177
        %p308 = pneg %p174
        %s309 = sand.u32 %s164, 1
        %s310 = scalar_lea.sflag [#allocation4], %s309
        %s311 = sand.u32 %s164, 1
        %s312 = smul.addr %s311, 16
        %s313 = scalar_lea.vmem [#allocation10], %s312
        %v314 = vld [vmem:[%s273] sm:$0xff]
        %v315 = vld [vmem:[%s273 + $0x8] sm:$0xff]
        %v316 = vld [vmem:[#allocation7] sm:$0xff]
        %v317 = vld [vmem:[#allocation7 + $0x8] sm:$0xff]
        %v318 = vld [vmem:[#allocation7 + $0x10] sm:$0xff]
        %v319 = vld [vmem:[#allocation7 + $0x18] sm:$0xff]
        %v320 = vld [vmem:[#allocation7 + $0x20] sm:$0xff]
        %v321 = vld [vmem:[#allocation7 + $0x28] sm:$0xff]
        %v322 = vld [vmem:[#allocation7 + $0x30] sm:$0xff]
        %v323 = vld [vmem:[#allocation7 + $0x38] sm:$0xff]
        %v324 = vld [vmem:[#allocation7 + $0x40] sm:$0xff]
        %v325 = vld [vmem:[#allocation7 + $0x48] sm:$0xff]
        %v326 = vld [vmem:[#allocation7 + $0x50] sm:$0xff]
        %v327 = vld [vmem:[#allocation7 + $0x58] sm:$0xff]
        %v328 = vld [vmem:[#allocation7 + $0x60] sm:$0xff]
        %v329 = vld [vmem:[#allocation7 + $0x68] sm:$0xff]
        %v330 = vld [vmem:[#allocation7 + $0x70] sm:$0xff]
        %v331 = vld [vmem:[#allocation7 + $0x78] sm:$0xff]
        %v332 = vld [vmem:[#allocation7 + $0x80] sm:$0xff]
        %v333 = vld [vmem:[#allocation7 + $0x88] sm:$0xff]
        %v334 = vld [vmem:[#allocation7 + $0x90] sm:$0xff]
        %v335 = vld [vmem:[#allocation7 + $0x98] sm:$0xff]
        %v336 = vld [vmem:[#allocation7 + $0xa0] sm:$0xff]
        %v337 = vld [vmem:[#allocation7 + $0xa8] sm:$0xff]
        %v338 = vld [vmem:[#allocation7 + $0xb0] sm:$0xff]
        %v339 = vld [vmem:[#allocation7 + $0xb8] sm:$0xff]
        %v340 = vld [vmem:[#allocation7 + $0xc0] sm:$0xff]
        %v341 = vld [vmem:[#allocation7 + $0xc8] sm:$0xff]
        %v342 = vld [vmem:[#allocation7 + $0xd0] sm:$0xff]
        %v343 = vld [vmem:[#allocation7 + $0xd8] sm:$0xff]
        %v344 = vld [vmem:[#allocation7 + $0xe0] sm:$0xff]
        %v345 = vld [vmem:[#allocation7 + $0xe8] sm:$0xff]
        %v346 = vld [vmem:[#allocation7 + $0xf0] sm:$0xff]
        %v347 = vld [vmem:[#allocation7 + $0xf8] sm:$0xff]
        %v348 = vld [vmem:[#allocation7 + $0x100] sm:$0xff]
        %v349 = vld [vmem:[#allocation7 + $0x108] sm:$0xff]
        %v350 = vld [vmem:[#allocation7 + $0x110] sm:$0xff]
        %v351 = vld [vmem:[#allocation7 + $0x118] sm:$0xff]
        %v352 = vld [vmem:[#allocation7 + $0x120] sm:$0xff]
        %v353 = vld [vmem:[#allocation7 + $0x128] sm:$0xff]
        %v354 = vld [vmem:[#allocation7 + $0x130] sm:$0xff]
        %v355 = vld [vmem:[#allocation7 + $0x138] sm:$0xff]
        %v356 = vld [vmem:[#allocation7 + $0x140] sm:$0xff]
        %v357 = vld [vmem:[#allocation7 + $0x148] sm:$0xff]
        %v358 = vld [vmem:[#allocation7 + $0x150] sm:$0xff]
        %v359 = vld [vmem:[#allocation7 + $0x158] sm:$0xff]
        %v360 = vld [vmem:[#allocation7 + $0x160] sm:$0xff]
        %v361 = vld [vmem:[#allocation7 + $0x168] sm:$0xff]
        %v362 = vld [vmem:[#allocation7 + $0x170] sm:$0xff]
        %v363 = vld [vmem:[#allocation7 + $0x178] sm:$0xff]
        %364 = vmatprep.subr.mxu0 %v317
        %365 = vmatpush1.msra.mxu0 %v316
        %366 = vmatprep.subr.mxu0 %v320
        %367 = vmatpush1.msra.mxu0 %v319
        %368 = vmatprep.subr.mxu0 %v323
        %369 = vmatpush1.msra.mxu0 %v322
        %370 = vmatprep.subr.mxu0 %v326
        %371 = vmatpush1.msra.mxu0 %v325
        %372 = vmatprep.subr.mxu0 %v329
        %373 = vmatpush1.msra.mxu0 %v328
        %374 = vmatprep.subr.mxu0 %v332
        %375 = vmatpush1.msra.mxu0 %v331
        %376 = vmatprep.subr.mxu0 %v335
        %377 = vmatpush1.msra.mxu0 %v334
        %378 = vmatprep.subr.mxu0 %v338
        %379 = vmatpush1.msra.mxu0 %v337
        %380 = vmatprep.subr.mxu0 %v341
        %381 = vmatpush1.msra.mxu0 %v340
        %382 = vmatprep.subr.mxu0 %v344
        %383 = vmatpush1.msra.mxu0 %v343
        %384 = vmatprep.subr.mxu0 %v347
        %385 = vmatpush1.msra.mxu0 %v346
        %386 = vmatprep.subr.mxu0 %v350
        %387 = vmatpush1.msra.mxu0 %v349
        %388 = vmatprep.subr.mxu0 %v353
        %389 = vmatpush1.msra.mxu0 %v352
        %390 = vmatprep.subr.mxu0 %v356
        %391 = vmatpush1.msra.mxu0 %v355
        %392 = vmatprep.subr.mxu0 %v359
        %393 = vmatpush1.msra.mxu0 %v358
        %394 = vmatprep.subr.mxu0 %v362
        %395 = vmatpush1.msra.mxu0 %v361
        %396 = vmatprep.subr.mxu0 0.0
        %397 = vmatpush1.msra.mxu0 0.0
        %398 = vmatprep.subr.mxu0 0.0
        %399 = vmatpush1.msra.mxu0 0.0
        %400 = vmatprep.subr.mxu0 0.0
        %401 = vmatpush1.msra.mxu0 0.0
        %402 = vmatprep.subr.mxu0 0.0
        %403 = vmatpush1.msra.mxu0 0.0
        %404 = vmatprep.subr.mxu0 0.0
        %405 = vmatpush1.msra.mxu0 0.0
        %406 = vmatprep.subr.mxu0 0.0
        %407 = vmatpush1.msra.mxu0 0.0
        %408 = vmatprep.subr.mxu0 0.0
        %409 = vmatpush1.msra.mxu0 0.0
        %410 = vmatprep.subr.mxu0 0.0
        %411 = vmatpush1.msra.mxu0 0.0
        %412 = vmatprep.subr.mxu0 0.0
        %413 = vmatpush1.msra.mxu0 0.0
        %414 = vmatprep.subr.mxu0 0.0
        %415 = vmatpush1.msra.mxu0 0.0
        %416 = vmatprep.subr.mxu0 0.0
        %417 = vmatpush1.msra.mxu0 0.0
        %418 = vmatprep.subr.mxu0 0.0
        %419 = vmatpush1.msra.mxu0 0.0
        %420 = vmatprep.subr.mxu0 0.0
        %421 = vmatpush1.msra.mxu0 0.0
        %422 = vmatprep.subr.mxu0 0.0
        %423 = vmatpush1.msra.mxu0 0.0
        %424 = vmatprep.subr.mxu0 0.0
        %425 = vmatpush1.msra.mxu0 0.0
        %426 = vmatprep.subr.mxu0 0.0
        %427 = vmatpush1.msra.mxu0 0.0
        %428 = vmatprep.mubr.f32.mxu0 0.0
        %429 = vmatmul.mubr.f32.gmra.mrb[0].mxu0 %v314
        %v430 = vpop.f32.mrb[0].mxu0
        %v431 = vadd.f32 0.0, %v430
        %v432 = vpop.f32.mrb[0].mxu0
        %v433 = vadd.f32 0.0, %v432
        %434 = vmatprep.mubr.f32.mxu0 0.0
        %435 = vmatmul.mubr.f32.gmra.mrb[0].mxu0 %v315
        %v436 = vpop.f32.mrb[0].mxu0
        %v437 = vadd.f32 0.0, %v436
        %v438 = vpop.f32.mrb[0].mxu0
        %v439 = vadd.f32 0.0, %v438
        %440 = vdwg.mxu0
        %441 = vmatprep.subr.mxu0 0.0
        %442 = vmatpush1.msra.mxu0 %v318
        %443 = vmatprep.subr.mxu0 0.0
        %444 = vmatpush1.msra.mxu0 %v321
        %445 = vmatprep.subr.mxu0 0.0
        %446 = vmatpush1.msra.mxu0 %v324
        %447 = vmatprep.subr.mxu0 0.0
        %448 = vmatpush1.msra.mxu0 %v327
        %449 = vmatprep.subr.mxu0 0.0
        %450 = vmatpush1.msra.mxu0 %v330
        %451 = vmatprep.subr.mxu0 0.0
        %452 = vmatpush1.msra.mxu0 %v333
        %453 = vmatprep.subr.mxu0 0.0
        %454 = vmatpush1.msra.mxu0 %v336
        %455 = vmatprep.subr.mxu0 0.0
        %456 = vmatpush1.msra.mxu0 %v339
        %457 = vmatprep.subr.mxu0 0.0
        %458 = vmatpush1.msra.mxu0 %v342
        %459 = vmatprep.subr.mxu0 0.0
        %460 = vmatpush1.msra.mxu0 %v345
        %461 = vmatprep.subr.mxu0 0.0
        %462 = vmatpush1.msra.mxu0 %v348
        %463 = vmatprep.subr.mxu0 0.0
        %464 = vmatpush1.msra.mxu0 %v351
        %465 = vmatprep.subr.mxu0 0.0
        %466 = vmatpush1.msra.mxu0 %v354
        %467 = vmatprep.subr.mxu0 0.0
        %468 = vmatpush1.msra.mxu0 %v357
        %469 = vmatprep.subr.mxu0 0.0
        %470 = vmatpush1.msra.mxu0 %v360
        %471 = vmatprep.subr.mxu0 0.0
        %472 = vmatpush1.msra.mxu0 %v363
        %473 = vmatprep.subr.mxu0 0.0
        %474 = vmatpush1.msra.mxu0 0.0
        %475 = vmatprep.subr.mxu0 0.0
        %476 = vmatpush1.msra.mxu0 0.0
        %477 = vmatprep.subr.mxu0 0.0
        %478 = vmatpush1.msra.mxu0 0.0
        %479 = vmatprep.subr.mxu0 0.0
        %480 = vmatpush1.msra.mxu0 0.0
        %481 = vmatprep.subr.mxu0 0.0
        %482 = vmatpush1.msra.mxu0 0.0
        %483 = vmatprep.subr.mxu0 0.0
        %484 = vmatpush1.msra.mxu0 0.0
        %485 = vmatprep.subr.mxu0 0.0
        %486 = vmatpush1.msra.mxu0 0.0
        %487 = vmatprep.subr.mxu0 0.0
        %488 = vmatpush1.msra.mxu0 0.0
        %489 = vmatprep.subr.mxu0 0.0
        %490 = vmatpush1.msra.mxu0 0.0
        %491 = vmatprep.subr.mxu0 0.0
        %492 = vmatpush1.msra.mxu0 0.0
        %493 = vmatprep.subr.mxu0 0.0
        %494 = vmatpush1.msra.mxu0 0.0
        %495 = vmatprep.subr.mxu0 0.0
        %496 = vmatpush1.msra.mxu0 0.0
        %497 = vmatprep.subr.mxu0 0.0
        %498 = vmatpush1.msra.mxu0 0.0
        %499 = vmatprep.subr.mxu0 0.0
        %500 = vmatpush1.msra.mxu0 0.0
        %501 = vmatprep.subr.mxu0 0.0
        %502 = vmatpush1.msra.mxu0 0.0
        %503 = vmatprep.subr.mxu0 0.0
        %504 = vmatpush1.msra.mxu0 0.0
        %505 = vmatprep.mubr.f32.mxu0 0.0
        %506 = vmatmul.mubr.f32.gmra.mrb[0].mxu0 %v314
        %v507 = vpop.f32.mrb[0].mxu0
        %v508 = vadd.f32 0.0, %v507
        %v509 = vpop.f32.mrb[0].mxu0
        %510 = vmatprep.mubr.f32.mxu0 0.0
        %511 = vmatmul.mubr.f32.gmra.mrb[0].mxu0 %v315
        %v512 = vpop.f32.mrb[0].mxu0
        %v513 = vadd.f32 0.0, %v512
        %v514 = vpop.f32.mrb[0].mxu0
        %515 = vdwg.mxu0
        %v516 = vld [vmem:[#allocation5] sm:$0xff]
        %v517 = vld [vmem:[#allocation5 + $0x8] sm:$0xff]
        %s518 = scalar_lea.vmem [#allocation5], 16
        %v519 = vld [vmem:[%s518] sm:$0xff]
        %v520 = vld [vmem:[%s518 + $0x8] sm:$0xff]
        %vm521 = vcmask 130048
        %v523 = vsel %vm521, %v519, 0
        %v526 = vsel %vm521, %v520, 0
        %528 = vmatprep.subr.mxu0 0.0
        %529 = vmatpush1.msra.mxu0 %v433
        %530 = vmatprep.subr.mxu0 0.0
        %531 = vmatpush1.msra.mxu0 %v439
        %532 = vmatprep.subr.mxu0 0.0
        %533 = vmatpush1.msra.mxu0 0.0
        %534 = vmatprep.subr.mxu0 0.0
        %535 = vmatpush1.msra.mxu0 0.0
        %536 = vmatprep.subr.mxu0 0.0
        %537 = vmatpush1.msra.mxu0 0.0
        %538 = vmatprep.subr.mxu0 0.0
        %539 = vmatpush1.msra.mxu0 0.0
        %540 = vmatprep.subr.mxu0 0.0
        %541 = vmatpush1.msra.mxu0 0.0
        %542 = vmatprep.subr.mxu0 0.0
        %543 = vmatpush1.msra.mxu0 0.0
        %544 = vmatprep.subr.mxu0 0.0
        %545 = vmatpush1.msra.mxu0 0.0
        %546 = vmatprep.subr.mxu0 0.0
        %547 = vmatpush1.msra.mxu0 0.0
        %548 = vmatprep.subr.mxu0 0.0
        %549 = vmatpush1.msra.mxu0 0.0
        %550 = vmatprep.subr.mxu0 0.0
        %551 = vmatpush1.msra.mxu0 0.0
        %552 = vmatprep.subr.mxu0 0.0
        %553 = vmatpush1.msra.mxu0 0.0
        %554 = vmatprep.subr.mxu0 0.0
        %555 = vmatpush1.msra.mxu0 0.0
        %556 = vmatprep.subr.mxu0 0.0
        %557 = vmatpush1.msra.mxu0 0.0
        %558 = vmatprep.subr.mxu0 0.0
        %559 = vmatpush1.msra.mxu0 0.0
        %560 = vmatprep.subr.mxu0 0.0
        %561 = vmatpush1.msra.mxu0 0.0
        %562 = vmatprep.subr.mxu0 0.0
        %563 = vmatpush1.msra.mxu0 0.0
        %564 = vmatprep.subr.mxu0 0.0
        %565 = vmatpush1.msra.mxu0 0.0
        %566 = vmatprep.subr.mxu0 0.0
        %567 = vmatpush1.msra.mxu0 0.0
        %568 = vmatprep.subr.mxu0 0.0
        %569 = vmatpush1.msra.mxu0 0.0
        %570 = vmatprep.subr.mxu0 0.0
        %571 = vmatpush1.msra.mxu0 0.0
        %572 = vmatprep.subr.mxu0 0.0
        %573 = vmatpush1.msra.mxu0 0.0
        %574 = vmatprep.subr.mxu0 0.0
        %575 = vmatpush1.msra.mxu0 0.0
        %576 = vmatprep.subr.mxu0 0.0
        %577 = vmatpush1.msra.mxu0 0.0
        %578 = vmatprep.subr.mxu0 0.0
        %579 = vmatpush1.msra.mxu0 0.0
        %580 = vmatprep.subr.mxu0 0.0
        %581 = vmatpush1.msra.mxu0 0.0
        %582 = vmatprep.subr.mxu0 0.0
        %583 = vmatpush1.msra.mxu0 0.0
        %584 = vmatprep.subr.mxu0 0.0
        %585 = vmatpush1.msra.mxu0 0.0
        %586 = vmatprep.subr.mxu0 0.0
        %587 = vmatpush1.msra.mxu0 0.0
        %588 = vmatprep.subr.mxu0 0.0
        %589 = vmatpush1.msra.mxu0 0.0
        %590 = vmatprep.subr.mxu0 0.0
        %591 = vmatpush1.msra.mxu0 0.0
        %592 = vmatprep.mubr.f32.mxu0 0.0
        %593 = vmatmul.mubr.f32.gmra.mrb[0].mxu0 %v523
        %v594 = vpop.f32.mrb[0].mxu0
        %v595 = vadd.f32 0.0, %v594
        %v596 = vpop.f32.mrb[0].mxu0
        %597 = vmatprep.mubr.f32.mxu0 0.0
        %598 = vmatmul.mubr.f32.gmra.mrb[0].mxu0 %v526
        %v599 = vpop.f32.mrb[0].mxu0
        %v600 = vadd.f32 0.0, %v599
        %v601 = vpop.f32.mrb[0].mxu0
        %602 = vdwg.mxu0
        %v604 = vsel %vm521, %v516, 0
        %v607 = vsel %vm521, %v517, 0
        %609 = vmatprep.subr.mxu0 0.0
        %610 = vmatpush1.msra.mxu0 %v431
        %611 = vmatprep.subr.mxu0 0.0
        %612 = vmatpush1.msra.mxu0 %v437
        %613 = vmatprep.subr.mxu0 0.0
        %614 = vmatpush1.msra.mxu0 0.0
        %615 = vmatprep.subr.mxu0 0.0
        %616 = vmatpush1.msra.mxu0 0.0
        %617 = vmatprep.subr.mxu0 0.0
        %618 = vmatpush1.msra.mxu0 0.0
        %619 = vmatprep.subr.mxu0 0.0
        %620 = vmatpush1.msra.mxu0 0.0
        %621 = vmatprep.subr.mxu0 0.0
        %622 = vmatpush1.msra.mxu0 0.0
        %623 = vmatprep.subr.mxu0 0.0
        %624 = vmatpush1.msra.mxu0 0.0
        %625 = vmatprep.subr.mxu0 0.0
        %626 = vmatpush1.msra.mxu0 0.0
        %627 = vmatprep.subr.mxu0 0.0
        %628 = vmatpush1.msra.mxu0 0.0
        %629 = vmatprep.subr.mxu0 0.0
        %630 = vmatpush1.msra.mxu0 0.0
        %631 = vmatprep.subr.mxu0 0.0
        %632 = vmatpush1.msra.mxu0 0.0
        %633 = vmatprep.subr.mxu0 0.0
        %634 = vmatpush1.msra.mxu0 0.0
        %635 = vmatprep.subr.mxu0 0.0
        %636 = vmatpush1.msra.mxu0 0.0
        %637 = vmatprep.subr.mxu0 0.0
        %638 = vmatpush1.msra.mxu0 0.0
        %639 = vmatprep.subr.mxu0 0.0
        %640 = vmatpush1.msra.mxu0 0.0
        %641 = vmatprep.subr.mxu0 0.0
        %642 = vmatpush1.msra.mxu0 0.0
        %643 = vmatprep.subr.mxu0 0.0
        %644 = vmatpush1.msra.mxu0 0.0
        %645 = vmatprep.subr.mxu0 0.0
        %646 = vmatpush1.msra.mxu0 0.0
        %647 = vmatprep.subr.mxu0 0.0
        %648 = vmatpush1.msra.mxu0 0.0
        %649 = vmatprep.subr.mxu0 0.0
        %650 = vmatpush1.msra.mxu0 0.0
        %651 = vmatprep.subr.mxu0 0.0
        %652 = vmatpush1.msra.mxu0 0.0
        %653 = vmatprep.subr.mxu0 0.0
        %654 = vmatpush1.msra.mxu0 0.0
        %655 = vmatprep.subr.mxu0 0.0
        %656 = vmatpush1.msra.mxu0 0.0
        %657 = vmatprep.subr.mxu0 0.0
        %658 = vmatpush1.msra.mxu0 0.0
        %659 = vmatprep.subr.mxu0 0.0
        %660 = vmatpush1.msra.mxu0 0.0
        %661 = vmatprep.subr.mxu0 0.0
        %662 = vmatpush1.msra.mxu0 0.0
        %663 = vmatprep.subr.mxu0 0.0
        %664 = vmatpush1.msra.mxu0 0.0
        %665 = vmatprep.subr.mxu0 0.0
        %666 = vmatpush1.msra.mxu0 0.0
        %667 = vmatprep.subr.mxu0 0.0
        %668 = vmatpush1.msra.mxu0 0.0
        %669 = vmatprep.subr.mxu0 0.0
        %670 = vmatpush1.msra.mxu0 0.0
        %671 = vmatprep.subr.mxu0 0.0
        %672 = vmatpush1.msra.mxu0 0.0
        %673 = vmatprep.mubr.f32.mxu0 0.0
        %674 = vmatmul.mubr.f32.gmra.mrb[0].mxu0 %v604
        %v675 = vpop.f32.mrb[0].mxu0
        %v676 = vadd.f32 %v595, %v675
        %v677 = vpop.f32.mrb[0].mxu0
        %678 = vmatprep.mubr.f32.mxu0 0.0
        %679 = vmatmul.mubr.f32.gmra.mrb[0].mxu0 %v607
        %v680 = vpop.f32.mrb[0].mxu0
        %v681 = vadd.f32 %v600, %v680
        %v682 = vpop.f32.mrb[0].mxu0
        %683 = vdwg.mxu0
        %s684 = scalar_lea.vmem [#allocation5], 32
        %v685 = vld [vmem:[%s684] sm:$0xff]
        %v686 = vld [vmem:[%s684 + $0x8] sm:$0xff]
        %v688 = vsel %vm521, %v685, 0
        %v691 = vsel %vm521, %v686, 0
        %693 = vmatprep.subr.mxu0 0.0
        %694 = vmatpush1.msra.mxu0 %v508
        %695 = vmatprep.subr.mxu0 0.0
        %696 = vmatpush1.msra.mxu0 %v513
        %697 = vmatprep.subr.mxu0 0.0
        %698 = vmatpush1.msra.mxu0 0.0
        %699 = vmatprep.subr.mxu0 0.0
        %700 = vmatpush1.msra.mxu0 0.0
        %701 = vmatprep.subr.mxu0 0.0
        %702 = vmatpush1.msra.mxu0 0.0
        %703 = vmatprep.subr.mxu0 0.0
        %704 = vmatpush1.msra.mxu0 0.0
        %705 = vmatprep.subr.mxu0 0.0
        %706 = vmatpush1.msra.mxu0 0.0
        %707 = vmatprep.subr.mxu0 0.0
        %708 = vmatpush1.msra.mxu0 0.0
        %709 = vmatprep.subr.mxu0 0.0
        %710 = vmatpush1.msra.mxu0 0.0
        %711 = vmatprep.subr.mxu0 0.0
        %712 = vmatpush1.msra.mxu0 0.0
        %713 = vmatprep.subr.mxu0 0.0
        %714 = vmatpush1.msra.mxu0 0.0
        %715 = vmatprep.subr.mxu0 0.0
        %716 = vmatpush1.msra.mxu0 0.0
        %717 = vmatprep.subr.mxu0 0.0
        %718 = vmatpush1.msra.mxu0 0.0
        %719 = vmatprep.subr.mxu0 0.0
        %720 = vmatpush1.msra.mxu0 0.0
        %721 = vmatprep.subr.mxu0 0.0
        %722 = vmatpush1.msra.mxu0 0.0
        %723 = vmatprep.subr.mxu0 0.0
        %724 = vmatpush1.msra.mxu0 0.0
        %725 = vmatprep.subr.mxu0 0.0
        %726 = vmatpush1.msra.mxu0 0.0
        %727 = vmatprep.subr.mxu0 0.0
        %728 = vmatpush1.msra.mxu0 0.0
        %729 = vmatprep.subr.mxu0 0.0
        %730 = vmatpush1.msra.mxu0 0.0
        %731 = vmatprep.subr.mxu0 0.0
        %732 = vmatpush1.msra.mxu0 0.0
        %733 = vmatprep.subr.mxu0 0.0
        %734 = vmatpush1.msra.mxu0 0.0
        %735 = vmatprep.subr.mxu0 0.0
        %736 = vmatpush1.msra.mxu0 0.0
        %737 = vmatprep.subr.mxu0 0.0
        %738 = vmatpush1.msra.mxu0 0.0
        %739 = vmatprep.subr.mxu0 0.0
        %740 = vmatpush1.msra.mxu0 0.0
        %741 = vmatprep.subr.mxu0 0.0
        %742 = vmatpush1.msra.mxu0 0.0
        %743 = vmatprep.subr.mxu0 0.0
        %744 = vmatpush1.msra.mxu0 0.0
        %745 = vmatprep.subr.mxu0 0.0
        %746 = vmatpush1.msra.mxu0 0.0
        %747 = vmatprep.subr.mxu0 0.0
        %748 = vmatpush1.msra.mxu0 0.0
        %749 = vmatprep.subr.mxu0 0.0
        %750 = vmatpush1.msra.mxu0 0.0
        %751 = vmatprep.subr.mxu0 0.0
        %752 = vmatpush1.msra.mxu0 0.0
        %753 = vmatprep.subr.mxu0 0.0
        %754 = vmatpush1.msra.mxu0 0.0
        %755 = vmatprep.subr.mxu0 0.0
        %756 = vmatpush1.msra.mxu0 0.0
        %757 = vmatprep.mubr.f32.mxu0 0.0
        %758 = vmatmul.mubr.f32.gmra.mrb[0].mxu0 %v688
        %v759 = vpop.f32.mrb[0].mxu0
        %v760 = vadd.f32 0.0, %v759
        %v761 = vpop.f32.mrb[0].mxu0
        %762 = vmatprep.mubr.f32.mxu0 0.0
        %763 = vmatmul.mubr.f32.gmra.mrb[0].mxu0 %v691
        %v764 = vpop.f32.mrb[0].mxu0
        %v765 = vadd.f32 0.0, %v764
        %v766 = vpop.f32.mrb[0].mxu0
        %767 = vdwg.mxu0
        %v768 = vadd.f32 %v676, %v760
        %v769 = vadd.f32 %v681, %v765
        %v770 = vld [vmem:[%s3] sm:$0x1]
        %v772 = vlaneseq
        %v773 = vshrl.u32 %v772, 7
        %v774 = vsub.s32 0, %v773
        %v775 = vrot.slane %v770, %v774
        %v777 = vadd.f32 %v768, %v775
        %v778 = vadd.f32 %v769, %v775
        %vm779 = vcmp.gt.f32.partialorder %v777, 0.0
        %vm780 = vcmp.gt.f32.partialorder %v778, 0.0
        %v781 = vmul.f32 %v777, 0.01
        %v782 = vmul.f32 %v778, 0.01
        %v783 = vsel %vm779, %v777, %v781
        %v784 = vsel %vm780, %v778, %v782
        %v785 = vld [vmem:[#allocation8] sm:$0xff]
        %v786 = vld [vmem:[#allocation8 + $0x8] sm:$0xff]
        %v787 = vld [vmem:[#allocation8 + $0x10] sm:$0xff]
        %v788 = vld [vmem:[#allocation8 + $0x18] sm:$0xff]
        %v789 = vld [vmem:[#allocation8 + $0x20] sm:$0xff]
        %v790 = vld [vmem:[#allocation8 + $0x28] sm:$0xff]
        %v791 = vld [vmem:[#allocation8 + $0x30] sm:$0xff]
        %v792 = vld [vmem:[#allocation8 + $0x38] sm:$0xff]
        %v793 = vld [vmem:[#allocation8 + $0x40] sm:$0xff]
        %v794 = vld [vmem:[#allocation8 + $0x48] sm:$0xff]
        %v795 = vld [vmem:[#allocation8 + $0x50] sm:$0xff]
        %v796 = vld [vmem:[#allocation8 + $0x58] sm:$0xff]
        %v797 = vld [vmem:[#allocation8 + $0x60] sm:$0xff]
        %v798 = vld [vmem:[#allocation8 + $0x68] sm:$0xff]
        %v799 = vld [vmem:[#allocation8 + $0x70] sm:$0xff]
        %v800 = vld [vmem:[#allocation8 + $0x78] sm:$0xff]
        %v801 = vld [vmem:[#allocation8 + $0x80] sm:$0xff]
        %v802 = vld [vmem:[#allocation8 + $0x88] sm:$0xff]
        %v803 = vld [vmem:[#allocation8 + $0x90] sm:$0xff]
        %v804 = vld [vmem:[#allocation8 + $0x98] sm:$0xff]
        %v805 = vld [vmem:[#allocation8 + $0xa0] sm:$0xff]
        %v806 = vld [vmem:[#allocation8 + $0xa8] sm:$0xff]
        %v807 = vld [vmem:[#allocation8 + $0xb0] sm:$0xff]
        %v808 = vld [vmem:[#allocation8 + $0xb8] sm:$0xff]
        %v809 = vld [vmem:[#allocation8 + $0xc0] sm:$0xff]
        %v810 = vld [vmem:[#allocation8 + $0xc8] sm:$0xff]
        %v811 = vld [vmem:[#allocation8 + $0xd0] sm:$0xff]
        %v812 = vld [vmem:[#allocation8 + $0xd8] sm:$0xff]
        %v813 = vld [vmem:[#allocation8 + $0xe0] sm:$0xff]
        %v814 = vld [vmem:[#allocation8 + $0xe8] sm:$0xff]
        %v815 = vld [vmem:[#allocation8 + $0xf0] sm:$0xff]
        %v816 = vld [vmem:[#allocation8 + $0xf8] sm:$0xff]
        %v817 = vld [vmem:[#allocation8 + $0x100] sm:$0xff]
        %v818 = vld [vmem:[#allocation8 + $0x108] sm:$0xff]
        %v819 = vld [vmem:[#allocation8 + $0x110] sm:$0xff]
        %v820 = vld [vmem:[#allocation8 + $0x118] sm:$0xff]
        %v821 = vld [vmem:[#allocation8 + $0x120] sm:$0xff]
        %v822 = vld [vmem:[#allocation8 + $0x128] sm:$0xff]
        %v823 = vld [vmem:[#allocation8 + $0x130] sm:$0xff]
        %v824 = vld [vmem:[#allocation8 + $0x138] sm:$0xff]
        %v825 = vld [vmem:[#allocation8 + $0x140] sm:$0xff]
        %v826 = vld [vmem:[#allocation8 + $0x148] sm:$0xff]
        %v827 = vld [vmem:[#allocation8 + $0x150] sm:$0xff]
        %v828 = vld [vmem:[#allocation8 + $0x158] sm:$0xff]
        %v829 = vld [vmem:[#allocation8 + $0x160] sm:$0xff]
        %v830 = vld [vmem:[#allocation8 + $0x168] sm:$0xff]
        %v831 = vld [vmem:[#allocation8 + $0x170] sm:$0xff]
        %v832 = vld [vmem:[#allocation8 + $0x178] sm:$0xff]
        %833 = vmatprep.subr.mxu0 %v786
        %834 = vmatpush1.msra.mxu0 %v785
        %835 = vmatprep.subr.mxu0 %v789
        %836 = vmatpush1.msra.mxu0 %v788
        %837 = vmatprep.subr.mxu0 %v792
        %838 = vmatpush1.msra.mxu0 %v791
        %839 = vmatprep.subr.mxu0 %v795
        %840 = vmatpush1.msra.mxu0 %v794
        %841 = vmatprep.subr.mxu0 %v798
        %842 = vmatpush1.msra.mxu0 %v797
        %843 = vmatprep.subr.mxu0 %v801
        %844 = vmatpush1.msra.mxu0 %v800
        %845 = vmatprep.subr.mxu0 %v804
        %846 = vmatpush1.msra.mxu0 %v803
        %847 = vmatprep.subr.mxu0 %v807
        %848 = vmatpush1.msra.mxu0 %v806
        %849 = vmatprep.subr.mxu0 %v810
        %850 = vmatpush1.msra.mxu0 %v809
        %851 = vmatprep.subr.mxu0 %v813
        %852 = vmatpush1.msra.mxu0 %v812
        %853 = vmatprep.subr.mxu0 %v816
        %854 = vmatpush1.msra.mxu0 %v815
        %855 = vmatprep.subr.mxu0 %v819
        %856 = vmatpush1.msra.mxu0 %v818
        %857 = vmatprep.subr.mxu0 %v822
        %858 = vmatpush1.msra.mxu0 %v821
        %859 = vmatprep.subr.mxu0 %v825
        %860 = vmatpush1.msra.mxu0 %v824
        %861 = vmatprep.subr.mxu0 %v828
        %862 = vmatpush1.msra.mxu0 %v827
        %863 = vmatprep.subr.mxu0 %v831
        %864 = vmatpush1.msra.mxu0 %v830
        %865 = vmatprep.subr.mxu0 0.0
        %866 = vmatpush1.msra.mxu0 0.0
        %867 = vmatprep.subr.mxu0 0.0
        %868 = vmatpush1.msra.mxu0 0.0
        %869 = vmatprep.subr.mxu0 0.0
        %870 = vmatpush1.msra.mxu0 0.0
        %871 = vmatprep.subr.mxu0 0.0
        %872 = vmatpush1.msra.mxu0 0.0
        %873 = vmatprep.subr.mxu0 0.0
        %874 = vmatpush1.msra.mxu0 0.0
        %875 = vmatprep.subr.mxu0 0.0
        %876 = vmatpush1.msra.mxu0 0.0
        %877 = vmatprep.subr.mxu0 0.0
        %878 = vmatpush1.msra.mxu0 0.0
        %879 = vmatprep.subr.mxu0 0.0
        %880 = vmatpush1.msra.mxu0 0.0
        %881 = vmatprep.subr.mxu0 0.0
        %882 = vmatpush1.msra.mxu0 0.0
        %883 = vmatprep.subr.mxu0 0.0
        %884 = vmatpush1.msra.mxu0 0.0
        %885 = vmatprep.subr.mxu0 0.0
        %886 = vmatpush1.msra.mxu0 0.0
        %887 = vmatprep.subr.mxu0 0.0
        %888 = vmatpush1.msra.mxu0 0.0
        %889 = vmatprep.subr.mxu0 0.0
        %890 = vmatpush1.msra.mxu0 0.0
        %891 = vmatprep.subr.mxu0 0.0
        %892 = vmatpush1.msra.mxu0 0.0
        %893 = vmatprep.subr.mxu0 0.0
        %894 = vmatpush1.msra.mxu0 0.0
        %895 = vmatprep.subr.mxu0 0.0
        %896 = vmatpush1.msra.mxu0 0.0
        %897 = vmatprep.mubr.f32.mxu0 0.0
        %898 = vmatmul.mubr.f32.gmra.mrb[0].mxu0 %v783
        %v899 = vpop.f32.mrb[0].mxu0
        %v900 = vadd.f32 0.0, %v899
        %v901 = vpop.f32.mrb[0].mxu0
        %v902 = vadd.f32 0.0, %v901
        %903 = vmatprep.mubr.f32.mxu0 0.0
        %904 = vmatmul.mubr.f32.gmra.mrb[0].mxu0 %v784
        %v905 = vpop.f32.mrb[0].mxu0
        %v906 = vadd.f32 0.0, %v905
        %v907 = vpop.f32.mrb[0].mxu0
        %v908 = vadd.f32 0.0, %v907
        %909 = vdwg.mxu0
        %910 = vmatprep.subr.mxu0 0.0
        %911 = vmatpush1.msra.mxu0 %v787
        %912 = vmatprep.subr.mxu0 0.0
        %913 = vmatpush1.msra.mxu0 %v790
        %914 = vmatprep.subr.mxu0 0.0
        %915 = vmatpush1.msra.mxu0 %v793
        %916 = vmatprep.subr.mxu0 0.0
        %917 = vmatpush1.msra.mxu0 %v796
        %918 = vmatprep.subr.mxu0 0.0
        %919 = vmatpush1.msra.mxu0 %v799
        %920 = vmatprep.subr.mxu0 0.0
        %921 = vmatpush1.msra.mxu0 %v802
        %922 = vmatprep.subr.mxu0 0.0
        %923 = vmatpush1.msra.mxu0 %v805
        %924 = vmatprep.subr.mxu0 0.0
        %925 = vmatpush1.msra.mxu0 %v808
        %926 = vmatprep.subr.mxu0 0.0
        %927 = vmatpush1.msra.mxu0 %v811
        %928 = vmatprep.subr.mxu0 0.0
        %929 = vmatpush1.msra.mxu0 %v814
        %930 = vmatprep.subr.mxu0 0.0
        %931 = vmatpush1.msra.mxu0 %v817
        %932 = vmatprep.subr.mxu0 0.0
        %933 = vmatpush1.msra.mxu0 %v820
        %934 = vmatprep.subr.mxu0 0.0
        %935 = vmatpush1.msra.mxu0 %v823
        %936 = vmatprep.subr.mxu0 0.0
        %937 = vmatpush1.msra.mxu0 %v826
        %938 = vmatprep.subr.mxu0 0.0
        %939 = vmatpush1.msra.mxu0 %v829
        %940 = vmatprep.subr.mxu0 0.0
        %941 = vmatpush1.msra.mxu0 %v832
        %942 = vmatprep.subr.mxu0 0.0
        %943 = vmatpush1.msra.mxu0 0.0
        %944 = vmatprep.subr.mxu0 0.0
        %945 = vmatpush1.msra.mxu0 0.0
        %946 = vmatprep.subr.mxu0 0.0
        %947 = vmatpush1.msra.mxu0 0.0
        %948 = vmatprep.subr.mxu0 0.0
        %949 = vmatpush1.msra.mxu0 0.0
        %950 = vmatprep.subr.mxu0 0.0
        %951 = vmatpush1.msra.mxu0 0.0
        %952 = vmatprep.subr.mxu0 0.0
        %953 = vmatpush1.msra.mxu0 0.0
        %954 = vmatprep.subr.mxu0 0.0
        %955 = vmatpush1.msra.mxu0 0.0
        %956 = vmatprep.subr.mxu0 0.0
        %957 = vmatpush1.msra.mxu0 0.0
        %958 = vmatprep.subr.mxu0 0.0
        %959 = vmatpush1.msra.mxu0 0.0
        %960 = vmatprep.subr.mxu0 0.0
        %961 = vmatpush1.msra.mxu0 0.0
        %962 = vmatprep.subr.mxu0 0.0
        %963 = vmatpush1.msra.mxu0 0.0
        %964 = vmatprep.subr.mxu0 0.0
        %965 = vmatpush1.msra.mxu0 0.0
        %966 = vmatprep.subr.mxu0 0.0
        %967 = vmatpush1.msra.mxu0 0.0
        %968 = vmatprep.subr.mxu0 0.0
        %969 = vmatpush1.msra.mxu0 0.0
        %970 = vmatprep.subr.mxu0 0.0
        %971 = vmatpush1.msra.mxu0 0.0
        %972 = vmatprep.subr.mxu0 0.0
        %973 = vmatpush1.msra.mxu0 0.0
        %974 = vmatprep.mubr.f32.mxu0 0.0
        %975 = vmatmul.mubr.f32.gmra.mrb[0].mxu0 %v783
        %v976 = vpop.f32.mrb[0].mxu0
        %v977 = vadd.f32 0.0, %v976
        %v978 = vpop.f32.mrb[0].mxu0
        %979 = vmatprep.mubr.f32.mxu0 0.0
        %980 = vmatmul.mubr.f32.gmra.mrb[0].mxu0 %v784
        %v981 = vpop.f32.mrb[0].mxu0
        %v982 = vadd.f32 0.0, %v981
        %v983 = vpop.f32.mrb[0].mxu0
        %984 = vdwg.mxu0
        %985 = vmatprep.subr.mxu0 0.0
        %986 = vmatpush1.msra.mxu0 %v902
        %987 = vmatprep.subr.mxu0 0.0
        %988 = vmatpush1.msra.mxu0 %v908
        %989 = vmatprep.subr.mxu0 0.0
        %990 = vmatpush1.msra.mxu0 0.0
        %991 = vmatprep.subr.mxu0 0.0
        %992 = vmatpush1.msra.mxu0 0.0
        %993 = vmatprep.subr.mxu0 0.0
        %994 = vmatpush1.msra.mxu0 0.0
        %995 = vmatprep.subr.mxu0 0.0
        %996 = vmatpush1.msra.mxu0 0.0
        %997 = vmatprep.subr.mxu0 0.0
        %998 = vmatpush1.msra.mxu0 0.0
        %999 = vmatprep.subr.mxu0 0.0
        %1000 = vmatpush1.msra.mxu0 0.0
        %1001 = vmatprep.subr.mxu0 0.0
        %1002 = vmatpush1.msra.mxu0 0.0
        %1003 = vmatprep.subr.mxu0 0.0
        %1004 = vmatpush1.msra.mxu0 0.0
        %1005 = vmatprep.subr.mxu0 0.0
        %1006 = vmatpush1.msra.mxu0 0.0
        %1007 = vmatprep.subr.mxu0 0.0
        %1008 = vmatpush1.msra.mxu0 0.0
        %1009 = vmatprep.subr.mxu0 0.0
        %1010 = vmatpush1.msra.mxu0 0.0
        %1011 = vmatprep.subr.mxu0 0.0
        %1012 = vmatpush1.msra.mxu0 0.0
        %1013 = vmatprep.subr.mxu0 0.0
        %1014 = vmatpush1.msra.mxu0 0.0
        %1015 = vmatprep.subr.mxu0 0.0
        %1016 = vmatpush1.msra.mxu0 0.0
        %1017 = vmatprep.subr.mxu0 0.0
        %1018 = vmatpush1.msra.mxu0 0.0
        %1019 = vmatprep.subr.mxu0 0.0
        %1020 = vmatpush1.msra.mxu0 0.0
        %1021 = vmatprep.subr.mxu0 0.0
        %1022 = vmatpush1.msra.mxu0 0.0
        %1023 = vmatprep.subr.mxu0 0.0
        %1024 = vmatpush1.msra.mxu0 0.0
        %1025 = vmatprep.subr.mxu0 0.0
        %1026 = vmatpush1.msra.mxu0 0.0
        %1027 = vmatprep.subr.mxu0 0.0
        %1028 = vmatpush1.msra.mxu0 0.0
        %1029 = vmatprep.subr.mxu0 0.0
        %1030 = vmatpush1.msra.mxu0 0.0
        %1031 = vmatprep.subr.mxu0 0.0
        %1032 = vmatpush1.msra.mxu0 0.0
        %1033 = vmatprep.subr.mxu0 0.0
        %1034 = vmatpush1.msra.mxu0 0.0
        %1035 = vmatprep.subr.mxu0 0.0
        %1036 = vmatpush1.msra.mxu0 0.0
        %1037 = vmatprep.subr.mxu0 0.0
        %1038 = vmatpush1.msra.mxu0 0.0
        %1039 = vmatprep.subr.mxu0 0.0
        %1040 = vmatpush1.msra.mxu0 0.0
        %1041 = vmatprep.subr.mxu0 0.0
        %1042 = vmatpush1.msra.mxu0 0.0
        %1043 = vmatprep.subr.mxu0 0.0
        %1044 = vmatpush1.msra.mxu0 0.0
        %1045 = vmatprep.subr.mxu0 0.0
        %1046 = vmatpush1.msra.mxu0 0.0
        %1047 = vmatprep.subr.mxu0 0.0
        %1048 = vmatpush1.msra.mxu0 0.0
        %1049 = vmatprep.mubr.f32.mxu0 0.0
        %1050 = vmatmul.mubr.f32.gmra.mrb[0].mxu0 %v523
        %v1051 = vpop.f32.mrb[0].mxu0
        %v1052 = vadd.f32 0.0, %v1051
        %v1053 = vpop.f32.mrb[0].mxu0
        %1054 = vmatprep.mubr.f32.mxu0 0.0
        %1055 = vmatmul.mubr.f32.gmra.mrb[0].mxu0 %v526
        %v1056 = vpop.f32.mrb[0].mxu0
        %v1057 = vadd.f32 0.0, %v1056
        %v1058 = vpop.f32.mrb[0].mxu0
        %1059 = vdwg.mxu0
        %1060 = vmatprep.subr.mxu0 0.0
        %1061 = vmatpush1.msra.mxu0 %v900
        %1062 = vmatprep.subr.mxu0 0.0
        %1063 = vmatpush1.msra.mxu0 %v906
        %1064 = vmatprep.subr.mxu0 0.0
        %1065 = vmatpush1.msra.mxu0 0.0
        %1066 = vmatprep.subr.mxu0 0.0
        %1067 = vmatpush1.msra.mxu0 0.0
        %1068 = vmatprep.subr.mxu0 0.0
        %1069 = vmatpush1.msra.mxu0 0.0
        %1070 = vmatprep.subr.mxu0 0.0
        %1071 = vmatpush1.msra.mxu0 0.0
        %1072 = vmatprep.subr.mxu0 0.0
        %1073 = vmatpush1.msra.mxu0 0.0
        %1074 = vmatprep.subr.mxu0 0.0
        %1075 = vmatpush1.msra.mxu0 0.0
        %1076 = vmatprep.subr.mxu0 0.0
        %1077 = vmatpush1.msra.mxu0 0.0
        %1078 = vmatprep.subr.mxu0 0.0
        %1079 = vmatpush1.msra.mxu0 0.0
        %1080 = vmatprep.subr.mxu0 0.0
        %1081 = vmatpush1.msra.mxu0 0.0
        %1082 = vmatprep.subr.mxu0 0.0
        %1083 = vmatpush1.msra.mxu0 0.0
        %1084 = vmatprep.subr.mxu0 0.0
        %1085 = vmatpush1.msra.mxu0 0.0
        %1086 = vmatprep.subr.mxu0 0.0
        %1087 = vmatpush1.msra.mxu0 0.0
        %1088 = vmatprep.subr.mxu0 0.0
        %1089 = vmatpush1.msra.mxu0 0.0
        %1090 = vmatprep.subr.mxu0 0.0
        %1091 = vmatpush1.msra.mxu0 0.0
        %1092 = vmatprep.subr.mxu0 0.0
        %1093 = vmatpush1.msra.mxu0 0.0
        %1094 = vmatprep.subr.mxu0 0.0
        %1095 = vmatpush1.msra.mxu0 0.0
        %1096 = vmatprep.subr.mxu0 0.0
        %1097 = vmatpush1.msra.mxu0 0.0
        %1098 = vmatprep.subr.mxu0 0.0
        %1099 = vmatpush1.msra.mxu0 0.0
        %1100 = vmatprep.subr.mxu0 0.0
        %1101 = vmatpush1.msra.mxu0 0.0
        %1102 = vmatprep.subr.mxu0 0.0
        %1103 = vmatpush1.msra.mxu0 0.0
        %1104 = vmatprep.subr.mxu0 0.0
        %1105 = vmatpush1.msra.mxu0 0.0
        %1106 = vmatprep.subr.mxu0 0.0
        %1107 = vmatpush1.msra.mxu0 0.0
        %1108 = vmatprep.subr.mxu0 0.0
        %1109 = vmatpush1.msra.mxu0 0.0
        %1110 = vmatprep.subr.mxu0 0.0
        %1111 = vmatpush1.msra.mxu0 0.0
        %1112 = vmatprep.subr.mxu0 0.0
        %1113 = vmatpush1.msra.mxu0 0.0
        %1114 = vmatprep.subr.mxu0 0.0
        %1115 = vmatpush1.msra.mxu0 0.0
        %1116 = vmatprep.subr.mxu0 0.0
        %1117 = vmatpush1.msra.mxu0 0.0
        %1118 = vmatprep.subr.mxu0 0.0
        %1119 = vmatpush1.msra.mxu0 0.0
        %1120 = vmatprep.subr.mxu0 0.0
        %1121 = vmatpush1.msra.mxu0 0.0
        %1122 = vmatprep.subr.mxu0 0.0
        %1123 = vmatpush1.msra.mxu0 0.0
        %1124 = vmatprep.mubr.f32.mxu0 0.0
        %1125 = vmatmul.mubr.f32.gmra.mrb[0].mxu0 %v604
        %v1126 = vpop.f32.mrb[0].mxu0
        %v1127 = vadd.f32 %v1052, %v1126
        %v1128 = vpop.f32.mrb[0].mxu0
        %1129 = vmatprep.mubr.f32.mxu0 0.0
        %1130 = vmatmul.mubr.f32.gmra.mrb[0].mxu0 %v607
        %v1131 = vpop.f32.mrb[0].mxu0
        %v1132 = vadd.f32 %v1057, %v1131
        %v1133 = vpop.f32.mrb[0].mxu0
        %1134 = vdwg.mxu0
        %1135 = vmatprep.subr.mxu0 0.0
        %1136 = vmatpush1.msra.mxu0 %v977
        %1137 = vmatprep.subr.mxu0 0.0
        %1138 = vmatpush1.msra.mxu0 %v982
        %1139 = vmatprep.subr.mxu0 0.0
        %1140 = vmatpush1.msra.mxu0 0.0
        %1141 = vmatprep.subr.mxu0 0.0
        %1142 = vmatpush1.msra.mxu0 0.0
        %1143 = vmatprep.subr.mxu0 0.0
        %1144 = vmatpush1.msra.mxu0 0.0
        %1145 = vmatprep.subr.mxu0 0.0
        %1146 = vmatpush1.msra.mxu0 0.0
        %1147 = vmatprep.subr.mxu0 0.0
        %1148 = vmatpush1.msra.mxu0 0.0
        %1149 = vmatprep.subr.mxu0 0.0
        %1150 = vmatpush1.msra.mxu0 0.0
        %1151 = vmatprep.subr.mxu0 0.0
        %1152 = vmatpush1.msra.mxu0 0.0
        %1153 = vmatprep.subr.mxu0 0.0
        %1154 = vmatpush1.msra.mxu0 0.0
        %1155 = vmatprep.subr.mxu0 0.0
        %1156 = vmatpush1.msra.mxu0 0.0
        %1157 = vmatprep.subr.mxu0 0.0
        %1158 = vmatpush1.msra.mxu0 0.0
        %1159 = vmatprep.subr.mxu0 0.0
        %1160 = vmatpush1.msra.mxu0 0.0
        %1161 = vmatprep.subr.mxu0 0.0
        %1162 = vmatpush1.msra.mxu0 0.0
        %1163 = vmatprep.subr.mxu0 0.0
        %1164 = vmatpush1.msra.mxu0 0.0
        %1165 = vmatprep.subr.mxu0 0.0
        %1166 = vmatpush1.msra.mxu0 0.0
        %1167 = vmatprep.subr.mxu0 0.0
        %1168 = vmatpush1.msra.mxu0 0.0
        %1169 = vmatprep.subr.mxu0 0.0
        %1170 = vmatpush1.msra.mxu0 0.0
        %1171 = vmatprep.subr.mxu0 0.0
        %1172 = vmatpush1.msra.mxu0 0.0
        %1173 = vmatprep.subr.mxu0 0.0
        %1174 = vmatpush1.msra.mxu0 0.0
        %1175 = vmatprep.subr.mxu0 0.0
        %1176 = vmatpush1.msra.mxu0 0.0
        %1177 = vmatprep.subr.mxu0 0.0
        %1178 = vmatpush1.msra.mxu0 0.0
        %1179 = vmatprep.subr.mxu0 0.0
        %1180 = vmatpush1.msra.mxu0 0.0
        %1181 = vmatprep.subr.mxu0 0.0
        %1182 = vmatpush1.msra.mxu0 0.0
        %1183 = vmatprep.subr.mxu0 0.0
        %1184 = vmatpush1.msra.mxu0 0.0
        %1185 = vmatprep.subr.mxu0 0.0
        %1186 = vmatpush1.msra.mxu0 0.0
        %1187 = vmatprep.subr.mxu0 0.0
        %1188 = vmatpush1.msra.mxu0 0.0
        %1189 = vmatprep.subr.mxu0 0.0
        %1190 = vmatpush1.msra.mxu0 0.0
        %1191 = vmatprep.subr.mxu0 0.0
        %1192 = vmatpush1.msra.mxu0 0.0
        %1193 = vmatprep.subr.mxu0 0.0
        %1194 = vmatpush1.msra.mxu0 0.0
        %1195 = vmatprep.subr.mxu0 0.0
        %1196 = vmatpush1.msra.mxu0 0.0
        %1197 = vmatprep.subr.mxu0 0.0
        %1198 = vmatpush1.msra.mxu0 0.0
        %1199 = vmatprep.mubr.f32.mxu0 0.0
        %1200 = vmatmul.mubr.f32.gmra.mrb[0].mxu0 %v688
        %v1201 = vpop.f32.mrb[0].mxu0
        %v1202 = vadd.f32 0.0, %v1201
        %v1203 = vpop.f32.mrb[0].mxu0
        %1204 = vmatprep.mubr.f32.mxu0 0.0
        %1205 = vmatmul.mubr.f32.gmra.mrb[0].mxu0 %v691
        %v1206 = vpop.f32.mrb[0].mxu0
        %v1207 = vadd.f32 0.0, %v1206
        %v1208 = vpop.f32.mrb[0].mxu0
        %1209 = vdwg.mxu0
        %v1210 = vadd.f32 %v1127, %v1202
        %v1211 = vadd.f32 %v1132, %v1207
        %v1212 = vld [vmem:[%s5] sm:$0x1]
        %v1214 = vlaneseq
        %v1215 = vshrl.u32 %v1214, 7
        %v1216 = vsub.s32 0, %v1215
        %v1217 = vrot.slane %v1212, %v1216
        %v1219 = vadd.f32 %v1210, %v1217
        %v1220 = vadd.f32 %v1211, %v1217
        %v1221 = vadd.f32 %v1219, %v314
        %v1222 = vadd.f32 %v1220, %v315
        %vm1223 = vcmp.gt.f32.partialorder %v1221, 0.0
        %vm1224 = vcmp.gt.f32.partialorder %v1222, 0.0
        %v1225 = vmul.f32 %v1221, 0.01
        %v1226 = vmul.f32 %v1222, 0.01
        %v1227 = vsel %vm1223, %v1221, %v1225
        %v1228 = vsel %vm1224, %v1222, %v1226
        %1229 = vst [vmem:[%s313] sm:$0xff] %v1227
        %1230 = vst [vmem:[%s313 + $0x8] sm:$0xff] %v1228
        %s1231 = sand.u32 %s164, 1
        %s1232 = scalar_lea.sflag [#allocation4], %s1231
        %s1233 = sand.u32 %s164, 1
        %s1234 = smul.addr %s1233, 16
        %s1235 = scalar_lea.vmem [#allocation10], %s1234
        // Predicated region
        $region61: #{tpu_custom_call.1} parent=43 // pred_check
          %p1236 = pneg %p174
        $region62: #{tpu_custom_call.1} parent=43 // pred_check_branch
          %1238 = sbr.rel (%p1236) target = $region64
        $region63: #{tpu_custom_call.1} parent=43 // pred_region
          %s1240 = ssub.s32 256, 256
          %1241 = vsyncadd %s1232, %s1240
          %s1242 = smul.addr %s25, 2
          %s1243 = smul.addr %s1242, 128
          %s1244 = scalar_lea.hbm %s6, %s1243
          %s1245 = sshll.u32 %s1235, 4
          %s1246 = int_to_ptr.vmem [resolvable:$true] %s1245
          %1251 = dma.vmem_to_hbm [thread:$0]  %s1246, 256, %s1244, %s1232, 128, 128, 8
        $region64: #{tpu_custom_call.1} parent=43 // pred_fallthru
          _
      $region44: #{tpu_custom_call.1} parent=5 // pred_fallthru
        _
      %p1252 = scmp.le.s32.totalorder 2, %s20
      // Predicated region
      $region65: #{tpu_custom_call.1} parent=5 // pred_check
        %p1253 = pneg %p1252
      $region66: #{tpu_custom_call.1} parent=5 // pred_check_branch
        %1255 = sbr.rel (%p1253) target = $region68
      $region67: #{tpu_custom_call.1} parent=5 // pred_region
        %s1256 = ssub.s32 %s20, 2
        // Predicated region
        $region69: #{tpu_custom_call.1} parent=67 // pred_check
          %p1257 = pneg %p180
        $region70: #{tpu_custom_call.1} parent=67 // pred_check_branch
          %1259 = sbr.rel (%p1257) target = $region72
        $region71: #{tpu_custom_call.1} parent=67 // pred_region
          %s1260 = sand.u32 %s165, 1
          %s1261 = scalar_lea.sflag [#allocation4], %s1260
          %s1262 = sand.u32 %s165, 1
          %s1263 = smul.addr %s1262, 16
          %s1264 = scalar_lea.vmem [#allocation10], %s1263
          %1265 = dma.done %s1261, 256
        $region72: #{tpu_custom_call.1} parent=67 // pred_fallthru
          _
      $region68: #{tpu_custom_call.1} parent=5 // pred_fallthru
        _
    $region6: #{tpu_custom_call.1} parent=1 // loop_footer
      %s24 = sadd.s32 1, %s20
    $region7: #{tpu_custom_call.1} parent=1 // loop_footer_branch
      %19 = sbr.rel target = $region3
    $region8: #{tpu_custom_call.1} parent=1 // loop_exit
      _
    %1266 = vsyncpa [#allocation3], 1
    %s1267 = scalar_lea.sflag [#allocation3], 1
    %1268 = vsyncpa %s1267, 1
    %1269 = vsyncpa [#allocation6], 1
    %1270 = vsyncpa [#allocation9], 1
    %1271 = vsyncpa [#allocation4], 1
    %s1272 = scalar_lea.sflag [#allocation4], 1
    %1273 = vsyncpa %s1272, 1

</llo_original>
